<compile_context>
chip_gen: v6e
topology: v6e:2x2x1
jax: 0.10.0
libtpu: 0.0.40
codegen_flags: <defaults>
</compile_context>

<pallas_src>
import functools

import jax
import jax.numpy as jnp
import numpy as np
from jax.experimental import pallas as pl
from jax.experimental.pallas import tpu as pltpu

_LANE = 128  # classifier output padded to a full lane width


def _layer_norm(y, g, b, eps=1e-5):
    mu = jnp.mean(y, axis=-1, keepdims=True)
    var = jnp.mean((y - mu) ** 2, axis=-1, keepdims=True)
    return (y - mu) * jax.lax.rsqrt(var + eps) * g + b


# ----------------------------------------------------------------------------
# One transformer block per grid step (b, l); activation carried in VMEM.
# ----------------------------------------------------------------------------
def transformer_layer_kernel(x_ref,
                             wqkv_ref, wp_ref, bp_ref,
                             w1_ref, b1_ref, w2_ref, b2_ref,
                             g1_ref, be1_ref, g2_ref, be2_ref,
                             gf_ref, bf_ref, wh_ref, bh_ref,
                             o_ref, act_ref,
                             *, num_heads, head_size, n_embd, t_out):
    l = pl.program_id(1)
    f32, bf16 = jnp.float32, jnp.bfloat16
    E, hs, H = n_embd, head_size, num_heads
    T = act_ref.shape[0]

    # First layer of this batch element: load activation into the VMEM carry.
    @pl.when(l == 0)
    def _():
        act_ref[...] = x_ref[...]

    x = act_ref[...]                                        # (T, E) float32

    # ---- Multi-head self-attention ---------------------------------------
    # Single fused q|k|v projection (scale pre-folded into the q columns).
    qkv = jnp.dot(x.astype(bf16), wqkv_ref[...],
                  preferred_element_type=f32).astype(bf16)  # (T, 128) bf16

    att_heads = []
    for h in range(H):                                      # static head loop
        qh = qkv[:, h * hs:(h + 1) * hs]                    # (T, hs)
        kh = qkv[:, E + h * hs:E + (h + 1) * hs]
        vh = qkv[:, 2 * E + h * hs:2 * E + (h + 1) * hs]
        # q @ k^T without an explicit transpose (rhs-contracted dot_general).
        s = jnp.einsum('qd,kd->qk', qh, kh,
                       preferred_element_type=f32)          # (T, T) f32
        s = s - jnp.max(s, axis=-1, keepdims=True)
        p = jnp.exp(s)
        p = (p / jnp.sum(p, axis=-1, keepdims=True)).astype(bf16)  # exact softmax
        att_heads.append(jnp.dot(p, vh, preferred_element_type=f32))

    # concat(heads) along lanes, then ONE output projection with K = H*hs = E.
    att = jnp.concatenate(att_heads, axis=-1).astype(bf16)  # (T, E) bf16
    att_out = (jnp.dot(att, wp_ref[...], preferred_element_type=f32)
               + bp_ref[...])

    # ---- Post-LN residual blocks (f32 element-wise math) -----------------
    y = _layer_norm(x + att_out, g1_ref[...], be1_ref[...])
    h1 = jnp.maximum(
        jnp.dot(y.astype(bf16), w1_ref[...], preferred_element_type=f32)
        + b1_ref[...], 0.0)
    ff = (jnp.dot(h1.astype(bf16), w2_ref[...], preferred_element_type=f32)
          + b2_ref[...])
    x_new = _layer_norm(y + ff, g2_ref[...], be2_ref[...])
    act_ref[...] = x_new                                    # carry to layer l+1

    # ---- Final LayerNorm + classifier head on the last row block only ----
    @pl.when(l == pl.num_programs(1) - 1)
    def _():
        x_tail = x_new[T - t_out:, :]                       # last t_out rows
        xf = _layer_norm(x_tail, gf_ref[...], bf_ref[...])
        o_ref[...] = (jnp.dot(xf.astype(bf16), wh_ref[...],
                              preferred_element_type=f32) + bh_ref[...])


# ----------------------------------------------------------------------------
# Wrapper: host-side weight prep + single pallas_call
# ----------------------------------------------------------------------------
def transformer_model(x, params, gf, bf, wh, bh, n_head):
    B, T, E = x.shape
    L = len(params)
    hs = E // n_head
    num_classes = wh.shape[1]
    bf16 = jnp.bfloat16
    scale = 1.0 / float(hs) ** 0.5
    n3 = ((3 * E + _LANE - 1) // _LANE) * _LANE             # padded qkv width
    t_out = 8 if T >= 8 else T                              # last sublane block

    def stack(key):
        return jnp.stack([p[key] for p in params])

    # Fused q|k|v weight: [wq*scale | wk | wv], zero-padded to 128 lanes.
    wqkv = jnp.stack([
        jnp.zeros((E, n3), jnp.float32).at[:, :3 * E].set(
            jnp.concatenate([p["wq"] * scale, p["wk"], p["wv"]], axis=1))
        for p in params]).astype(bf16)                      # (L, E, n3)

    wp = stack("wp").astype(bf16)                           # (L, E, E)
    bp = stack("bp")                                        # (L, 1, E)
    w1 = stack("w1").astype(bf16)
    b1 = stack("b1")
    w2 = stack("w2").astype(bf16)
    b2 = stack("b2")
    g1, be1, g2, be2 = stack("g1"), stack("be1"), stack("g2"), stack("be2")

    wh_pad = (jnp.zeros((E, _LANE), jnp.float32)
              .at[:, :num_classes].set(wh).astype(bf16))
    bh_pad = jnp.zeros((1, _LANE), jnp.float32).at[:, :num_classes].set(bh)

    layer_ws = (wqkv, wp, bp, w1, b1, w2, b2, g1, be1, g2, be2)
    const_ws = (gf, bf, wh_pad, bh_pad)

    def layer_spec(a):   # fetch only layer l's slice of the stacked weights
        nd = a.ndim
        return pl.BlockSpec((None,) + a.shape[1:],
                            lambda b, l, _nd=nd: (l,) + (0,) * (_nd - 1))

    def const_spec(a):   # layer-invariant weights (final LN + head)
        nd = a.ndim
        return pl.BlockSpec(a.shape, lambda b, l, _nd=nd: (0,) * _nd)

    kernel = functools.partial(transformer_layer_kernel,
                               num_heads=n_head, head_size=hs,
                               n_embd=E, t_out=t_out)

    out = pl.pallas_call(
        kernel,
        out_shape=jax.ShapeDtypeStruct((B, t_out, _LANE), jnp.float32),
        grid=(B, L),
        in_specs=[pl.BlockSpec((None, T, E), lambda b, l: (b, 0, 0))]
                 + [layer_spec(a) for a in layer_ws]
                 + [const_spec(a) for a in const_ws],
        out_specs=pl.BlockSpec((None, t_out, _LANE), lambda b, l: (b, 0, 0)),
        scratch_shapes=[pltpu.VMEM((T, E), jnp.float32)],   # layer-carry act.
        compiler_params=pltpu.CompilerParams(
            dimension_semantics=("parallel", "arbitrary")),
    )(x, *layer_ws, *const_ws)

    # TODO(synk): when B is small/odd on v7x, add a second parallel grid axis
    # (e.g. split T) so both TensorCores get work.
    return out[:, -1, :num_classes]


# ----------------------------------------------------------------------------
# Pure-JAX reference mirroring the kernel's dtype policy (bf16 MXU operands,
# f32 accumulation, f32 LayerNorm/softmax, scale folded into wq).
# ----------------------------------------------------------------------------
def ref_forward(x, params, gf, bf, wh, bh, n_head):
    E = x.shape[-1]
    hs = E // n_head
    bf16, f32 = jnp.bfloat16, jnp.float32
    scale = 1.0 / float(hs) ** 0.5

    def mm(a, w):
        return jnp.dot(a.astype(bf16), w.astype(bf16), preferred_element_type=f32)

    def ln(y, g, b):
        mu = y.mean(-1, keepdims=True)
        var = ((y - mu) ** 2).mean(-1, keepdims=True)
        return (y - mu) * jax.lax.rsqrt(var + 1e-5) * g + b

    for p in params:
        B, T, _ = x.shape
        q = mm(x, p["wq"] * scale).reshape(B, T, n_head, hs).transpose(0, 2, 1, 3)
        k = mm(x, p["wk"]).reshape(B, T, n_head, hs).transpose(0, 2, 1, 3)
        v = mm(x, p["wv"]).reshape(B, T, n_head, hs).transpose(0, 2, 1, 3)
        s = jnp.einsum("bhqd,bhkd->bhqk", q.astype(bf16), k.astype(bf16),
                       preferred_element_type=f32)
        a = jax.nn.softmax(s, axis=-1)
        o = jnp.einsum("bhqk,bhkd->bhqd", a.astype(bf16), v.astype(bf16),
                       preferred_element_type=f32)
        o = o.transpose(0, 2, 1, 3).reshape(B, T, E)
        att = mm(o, p["wp"]) + p["bp"]
        x = ln(x + att, p["g1"], p["be1"])
        h1 = jax.nn.relu(mm(x, p["w1"]) + p["b1"])
        ff = mm(h1, p["w2"]) + p["b2"]
        x = ln(x + ff, p["g2"], p["be2"])
    xl = ln(x[:, -1, :], gf, bf)
    return mm(xl, wh) + bh


# ----------------------------------------------------------------------------
# Main
# ----------------------------------------------------------------------------
if __name__ == "__main__":
    num_classes, n_embd, n_head, hidden_size, n_layers = 5, 32, 4, 64, 2
    B, T = 2, 8

    key = jax.random.PRNGKey(0)
    key, xk = jax.random.split(key)
    x = jax.random.normal(xk, (B, T, n_embd), dtype=jnp.float32)

    def init_linear(k, fan_in, fan_out, bias=True):
        k1, k2 = jax.random.split(k)
        lim = 1.0 / float(np.sqrt(fan_in))
        w = jax.random.uniform(k1, (fan_in, fan_out), jnp.float32, -lim, lim)
        b = (jax.random.uniform(k2, (1, fan_out), jnp.float32, -lim, lim)
             if bias else None)
        return w, b

    params = []
    for _ in range(n_layers):
        key, *ks = jax.random.split(key, 7)
        wq, _ = init_linear(ks[0], n_embd, n_embd, bias=False)
        wk, _ = init_linear(ks[1], n_embd, n_embd, bias=False)
        wv, _ = init_linear(ks[2], n_embd, n_embd, bias=False)
        wp, bp = init_linear(ks[3], n_embd, n_embd)
        w1, b1 = init_linear(ks[4], n_embd, hidden_size)
        w2, b2 = init_linear(ks[5], hidden_size, n_embd)
        params.append(dict(
            wq=wq, wk=wk, wv=wv, wp=wp, bp=bp,
            w1=w1, b1=b1, w2=w2, b2=b2,
            g1=jnp.ones((1, n_embd), jnp.float32),
            be1=jnp.zeros((1, n_embd), jnp.float32),
            g2=jnp.ones((1, n_embd), jnp.float32),
            be2=jnp.zeros((1, n_embd), jnp.float32),
        ))

    key, hk = jax.random.split(key)
    gf = jnp.ones((1, n_embd), jnp.float32)
    bf = jnp.zeros((1, n_embd), jnp.float32)
    wh, bh = init_linear(hk, n_embd, num_classes)

    logits = transformer_model(x, params, gf, bf, wh, bh, n_head)
    logits = jax.block_until_ready(logits)

    ref = ref_forward(x, params, gf, bf, wh, bh, n_head)
    assert logits.shape == (B, num_classes)
    np.testing.assert_allclose(np.asarray(logits), np.asarray(ref),
                               rtol=2e-3, atol=2e-3)
    print("KERNEL_OK")
</pallas_src>

<mosaic_0001>
module attributes {stable_mosaic.version = 11 : i64} {
  func.func @transformer_layer_kernel(%arg0: i32, %arg1: i32, %arg2: memref<1x8x32xf32, #tpu.memory_space<vmem>>, %arg3: memref<1x32x128xbf16, #tpu.memory_space<vmem>>, %arg4: memref<1x32x32xbf16, #tpu.memory_space<vmem>>, %arg5: memref<1x1x32xf32, #tpu.memory_space<vmem>>, %arg6: memref<1x32x64xbf16, #tpu.memory_space<vmem>>, %arg7: memref<1x1x64xf32, #tpu.memory_space<vmem>>, %arg8: memref<1x64x32xbf16, #tpu.memory_space<vmem>>, %arg9: memref<1x1x32xf32, #tpu.memory_space<vmem>>, %arg10: memref<1x1x32xf32, #tpu.memory_space<vmem>>, %arg11: memref<1x1x32xf32, #tpu.memory_space<vmem>>, %arg12: memref<1x1x32xf32, #tpu.memory_space<vmem>>, %arg13: memref<1x1x32xf32, #tpu.memory_space<vmem>>, %arg14: memref<1x32xf32, #tpu.memory_space<vmem>>, %arg15: memref<1x32xf32, #tpu.memory_space<vmem>>, %arg16: memref<32x128xbf16, #tpu.memory_space<vmem>>, %arg17: memref<1x128xf32, #tpu.memory_space<vmem>>, %arg18: memref<1x8x128xf32, #tpu.memory_space<vmem>>, %arg19: memref<8x32xf32, #tpu.memory_space<vmem>>) attributes {dimension_semantics = [#tpu.dimension_semantics<parallel>, #tpu.dimension_semantics<arbitrary>], iteration_bounds = array<i64: 2, 2>, scalar_prefetch = 0 : i64, scratch_operands = 1 : i64, tpu.core_type = #tpu.core_type<tc>, window_params = [{transform_indices = @transform_0, window_bounds = array<i64: 1, 8, 32>}, {transform_indices = @transform_1, window_bounds = array<i64: 1, 32, 128>}, {transform_indices = @transform_2, window_bounds = array<i64: 1, 32, 32>}, {transform_indices = @transform_3, window_bounds = array<i64: 1, 1, 32>}, {transform_indices = @transform_4, window_bounds = array<i64: 1, 32, 64>}, {transform_indices = @transform_5, window_bounds = array<i64: 1, 1, 64>}, {transform_indices = @transform_6, window_bounds = array<i64: 1, 64, 32>}, {transform_indices = @transform_7, window_bounds = array<i64: 1, 1, 32>}, {transform_indices = @transform_8, window_bounds = array<i64: 1, 1, 32>}, {transform_indices = @transform_9, window_bounds = array<i64: 1, 1, 32>}, {transform_indices = @transform_10, window_bounds = array<i64: 1, 1, 32>}, {transform_indices = @transform_11, window_bounds = array<i64: 1, 1, 32>}, {pipeline_mode = #tpu.pipeline_mode<synchronous>, transform_indices = @transform_12, window_bounds = array<i64: 1, 32>}, {pipeline_mode = #tpu.pipeline_mode<synchronous>, transform_indices = @transform_13, window_bounds = array<i64: 1, 32>}, {pipeline_mode = #tpu.pipeline_mode<synchronous>, transform_indices = @transform_14, window_bounds = array<i64: 32, 128>}, {pipeline_mode = #tpu.pipeline_mode<synchronous>, transform_indices = @transform_15, window_bounds = array<i64: 1, 128>}, {transform_indices = @transform_16, window_bounds = array<i64: 1, 8, 128>}]} {
    %c0_i32 = arith.constant 0 : i32
    %0 = arith.cmpi eq, %arg1, %c0_i32 : i32
    %1 = arith.extui %0 : i1 to i32
    %c0_i32_0 = arith.constant 0 : i32
    %2 = arith.cmpi ne, %1, %c0_i32_0 : i32
    scf.if %2 {
      %c0_68 = arith.constant 0 : index
      %c0_69 = arith.constant 0 : index
      %c0_70 = arith.constant 0 : index
      %154 = vector.load %arg2[%c0_68, %c0_69, %c0_70] : memref<1x8x32xf32, #tpu.memory_space<vmem>>, vector<1x8x32xf32>
      %155 = vector.shape_cast %154 : vector<1x8x32xf32> to vector<8x32xf32>
      %c0_71 = arith.constant 0 : index
      %c0_72 = arith.constant 0 : index
      %156 = vector.load %arg19[%c0_71, %c0_72] : memref<8x32xf32, #tpu.memory_space<vmem>>, vector<8x32xf32>
      tpu.vector_store %arg19[%c0_71, %c0_72], %155 {strides = array<i32>} : memref<8x32xf32, #tpu.memory_space<vmem>>, vector<8x32xf32>,
    } else {
    }
    %c0 = arith.constant 0 : index
    %c0_1 = arith.constant 0 : index
    %3 = vector.load %arg19[%c0, %c0_1] : memref<8x32xf32, #tpu.memory_space<vmem>>, vector<8x32xf32>
    %4 = arith.truncf %3 : vector<8x32xf32> to vector<8x32xbf16>
    %c0_2 = arith.constant 0 : index
    %c0_3 = arith.constant 0 : index
    %c0_4 = arith.constant 0 : index
    %5 = vector.load %arg3[%c0_2, %c0_3, %c0_4] : memref<1x32x128xbf16, #tpu.memory_space<vmem>>, vector<1x32x128xbf16>
    %6 = vector.shape_cast %5 : vector<1x32x128xbf16> to vector<32x128xbf16>
    %cst = arith.constant dense<0.000000e+00> : vector<8x128xf32>
    %7 = tpu.matmul %4, %6, %cst {dimension_numbers = #tpu.dot_dimension_numbers<[1], [0], [0], [1], [0, 0, 1, 1], [], []>} : vector<8x32xbf16>, vector<32x128xbf16>, vector<8x128xf32> -> vector<8x128xf32>
    %8 = arith.truncf %7 : vector<8x128xf32> to vector<8x128xbf16>
    %9 = vector.extract_strided_slice %8 {offsets = [0, 0], sizes = [8, 8], strides = [1, 1]} : vector<8x128xbf16> to vector<8x8xbf16>
    %10 = vector.extract_strided_slice %8 {offsets = [0, 32], sizes = [8, 8], strides = [1, 1]} : vector<8x128xbf16> to vector<8x8xbf16>
    %11 = vector.extract_strided_slice %8 {offsets = [0, 64], sizes = [8, 8], strides = [1, 1]} : vector<8x128xbf16> to vector<8x8xbf16>
    "tpu.trace_start"() <{level = 10 : i32, message = "qd,kd->qk"}> : () -> ()
    %cst_5 = arith.constant dense<0.000000e+00> : vector<8x8xf32>
    %12 = tpu.matmul %9, %10, %cst_5 {dimension_numbers = #tpu.dot_dimension_numbers<[1], [1], [0], [0], [0, 0, 1, 0], [], []>} : vector<8x8xbf16>, vector<8x8xbf16>, vector<8x8xf32> -> vector<8x8xf32>
    "tpu.trace_stop"() : () -> ()
    %cst_6 = arith.constant dense<0xFF800000> : vector<8xf32>
    %13 = vector.multi_reduction <maximumf>, %12, %cst_6 [1] : vector<8x8xf32> to vector<8xf32>
    %14 = vector.shape_cast %13 : vector<8xf32> to vector<8x1xf32>
    %15 = vector.broadcast %14 : vector<8x1xf32> to vector<8x8xf32>
    %16 = arith.subf %12, %15 : vector<8x8xf32>
    %17 = math.exp %16 : vector<8x8xf32>
    %cst_7 = arith.constant dense<0.000000e+00> : vector<8xf32>
    %18 = vector.multi_reduction <add>, %17, %cst_7 [1] : vector<8x8xf32> to vector<8xf32>
    %19 = vector.shape_cast %18 : vector<8xf32> to vector<8x1xf32>
    %20 = vector.broadcast %19 : vector<8x1xf32> to vector<8x8xf32>
    %21 = arith.divf %17, %20 : vector<8x8xf32>
    %22 = arith.truncf %21 : vector<8x8xf32> to vector<8x8xbf16>
    %cst_8 = arith.constant dense<0.000000e+00> : vector<8x8xf32>
    %23 = tpu.matmul %22, %11, %cst_8 {dimension_numbers = #tpu.dot_dimension_numbers<[1], [0], [0], [1], [0, 0, 1, 1], [], []>} : vector<8x8xbf16>, vector<8x8xbf16>, vector<8x8xf32> -> vector<8x8xf32>
    %24 = vector.extract_strided_slice %8 {offsets = [0, 8], sizes = [8, 8], strides = [1, 1]} : vector<8x128xbf16> to vector<8x8xbf16>
    %25 = vector.extract_strided_slice %8 {offsets = [0, 40], sizes = [8, 8], strides = [1, 1]} : vector<8x128xbf16> to vector<8x8xbf16>
    %26 = vector.extract_strided_slice %8 {offsets = [0, 72], sizes = [8, 8], strides = [1, 1]} : vector<8x128xbf16> to vector<8x8xbf16>
    "tpu.trace_start"() <{level = 10 : i32, message = "qd,kd->qk"}> : () -> ()
    %cst_9 = arith.constant dense<0.000000e+00> : vector<8x8xf32>
    %27 = tpu.matmul %24, %25, %cst_9 {dimension_numbers = #tpu.dot_dimension_numbers<[1], [1], [0], [0], [0, 0, 1, 0], [], []>} : vector<8x8xbf16>, vector<8x8xbf16>, vector<8x8xf32> -> vector<8x8xf32>
    "tpu.trace_stop"() : () -> ()
    %cst_10 = arith.constant dense<0xFF800000> : vector<8xf32>
    %28 = vector.multi_reduction <maximumf>, %27, %cst_10 [1] : vector<8x8xf32> to vector<8xf32>
    %29 = vector.shape_cast %28 : vector<8xf32> to vector<8x1xf32>
    %30 = vector.broadcast %29 : vector<8x1xf32> to vector<8x8xf32>
    %31 = arith.subf %27, %30 : vector<8x8xf32>
    %32 = math.exp %31 : vector<8x8xf32>
    %cst_11 = arith.constant dense<0.000000e+00> : vector<8xf32>
    %33 = vector.multi_reduction <add>, %32, %cst_11 [1] : vector<8x8xf32> to vector<8xf32>
    %34 = vector.shape_cast %33 : vector<8xf32> to vector<8x1xf32>
    %35 = vector.broadcast %34 : vector<8x1xf32> to vector<8x8xf32>
    %36 = arith.divf %32, %35 : vector<8x8xf32>
    %37 = arith.truncf %36 : vector<8x8xf32> to vector<8x8xbf16>
    %cst_12 = arith.constant dense<0.000000e+00> : vector<8x8xf32>
    %38 = tpu.matmul %37, %26, %cst_12 {dimension_numbers = #tpu.dot_dimension_numbers<[1], [0], [0], [1], [0, 0, 1, 1], [], []>} : vector<8x8xbf16>, vector<8x8xbf16>, vector<8x8xf32> -> vector<8x8xf32>
    %39 = vector.extract_strided_slice %8 {offsets = [0, 16], sizes = [8, 8], strides = [1, 1]} : vector<8x128xbf16> to vector<8x8xbf16>
    %40 = vector.extract_strided_slice %8 {offsets = [0, 48], sizes = [8, 8], strides = [1, 1]} : vector<8x128xbf16> to vector<8x8xbf16>
    %41 = vector.extract_strided_slice %8 {offsets = [0, 80], sizes = [8, 8], strides = [1, 1]} : vector<8x128xbf16> to vector<8x8xbf16>
    "tpu.trace_start"() <{level = 10 : i32, message = "qd,kd->qk"}> : () -> ()
    %cst_13 = arith.constant dense<0.000000e+00> : vector<8x8xf32>
    %42 = tpu.matmul %39, %40, %cst_13 {dimension_numbers = #tpu.dot_dimension_numbers<[1], [1], [0], [0], [0, 0, 1, 0], [], []>} : vector<8x8xbf16>, vector<8x8xbf16>, vector<8x8xf32> -> vector<8x8xf32>
    "tpu.trace_stop"() : () -> ()
    %cst_14 = arith.constant dense<0xFF800000> : vector<8xf32>
    %43 = vector.multi_reduction <maximumf>, %42, %cst_14 [1] : vector<8x8xf32> to vector<8xf32>
    %44 = vector.shape_cast %43 : vector<8xf32> to vector<8x1xf32>
    %45 = vector.broadcast %44 : vector<8x1xf32> to vector<8x8xf32>
    %46 = arith.subf %42, %45 : vector<8x8xf32>
    %47 = math.exp %46 : vector<8x8xf32>
    %cst_15 = arith.constant dense<0.000000e+00> : vector<8xf32>
    %48 = vector.multi_reduction <add>, %47, %cst_15 [1] : vector<8x8xf32> to vector<8xf32>
    %49 = vector.shape_cast %48 : vector<8xf32> to vector<8x1xf32>
    %50 = vector.broadcast %49 : vector<8x1xf32> to vector<8x8xf32>
    %51 = arith.divf %47, %50 : vector<8x8xf32>
    %52 = arith.truncf %51 : vector<8x8xf32> to vector<8x8xbf16>
    %cst_16 = arith.constant dense<0.000000e+00> : vector<8x8xf32>
    %53 = tpu.matmul %52, %41, %cst_16 {dimension_numbers = #tpu.dot_dimension_numbers<[1], [0], [0], [1], [0, 0, 1, 1], [], []>} : vector<8x8xbf16>, vector<8x8xbf16>, vector<8x8xf32> -> vector<8x8xf32>
    %54 = vector.extract_strided_slice %8 {offsets = [0, 24], sizes = [8, 8], strides = [1, 1]} : vector<8x128xbf16> to vector<8x8xbf16>
    %55 = vector.extract_strided_slice %8 {offsets = [0, 56], sizes = [8, 8], strides = [1, 1]} : vector<8x128xbf16> to vector<8x8xbf16>
    %56 = vector.extract_strided_slice %8 {offsets = [0, 88], sizes = [8, 8], strides = [1, 1]} : vector<8x128xbf16> to vector<8x8xbf16>
    "tpu.trace_start"() <{level = 10 : i32, message = "qd,kd->qk"}> : () -> ()
    %cst_17 = arith.constant dense<0.000000e+00> : vector<8x8xf32>
    %57 = tpu.matmul %54, %55, %cst_17 {dimension_numbers = #tpu.dot_dimension_numbers<[1], [1], [0], [0], [0, 0, 1, 0], [], []>} : vector<8x8xbf16>, vector<8x8xbf16>, vector<8x8xf32> -> vector<8x8xf32>
    "tpu.trace_stop"() : () -> ()
    %cst_18 = arith.constant dense<0xFF800000> : vector<8xf32>
    %58 = vector.multi_reduction <maximumf>, %57, %cst_18 [1] : vector<8x8xf32> to vector<8xf32>
    %59 = vector.shape_cast %58 : vector<8xf32> to vector<8x1xf32>
    %60 = vector.broadcast %59 : vector<8x1xf32> to vector<8x8xf32>
    %61 = arith.subf %57, %60 : vector<8x8xf32>
    %62 = math.exp %61 : vector<8x8xf32>
    %cst_19 = arith.constant dense<0.000000e+00> : vector<8xf32>
    %63 = vector.multi_reduction <add>, %62, %cst_19 [1] : vector<8x8xf32> to vector<8xf32>
    %64 = vector.shape_cast %63 : vector<8xf32> to vector<8x1xf32>
    %65 = vector.broadcast %64 : vector<8x1xf32> to vector<8x8xf32>
    %66 = arith.divf %62, %65 : vector<8x8xf32>
    %67 = arith.truncf %66 : vector<8x8xf32> to vector<8x8xbf16>
    %cst_20 = arith.constant dense<0.000000e+00> : vector<8x8xf32>
    %68 = tpu.matmul %67, %56, %cst_20 {dimension_numbers = #tpu.dot_dimension_numbers<[1], [0], [0], [1], [0, 0, 1, 1], [], []>} : vector<8x8xbf16>, vector<8x8xbf16>, vector<8x8xf32> -> vector<8x8xf32>
    %69 = tpu.concatenate %23, %38, %53, %68 in 1 : vector<8x8xf32>, vector<8x8xf32>, vector<8x8xf32>, vector<8x8xf32> -> vector<8x32xf32>
    %70 = arith.truncf %69 : vector<8x32xf32> to vector<8x32xbf16>
    %c0_21 = arith.constant 0 : index
    %c0_22 = arith.constant 0 : index
    %c0_23 = arith.constant 0 : index
    %71 = vector.load %arg4[%c0_21, %c0_22, %c0_23] : memref<1x32x32xbf16, #tpu.memory_space<vmem>>, vector<1x32x32xbf16>
    %72 = vector.shape_cast %71 : vector<1x32x32xbf16> to vector<32x32xbf16>
    %cst_24 = arith.constant dense<0.000000e+00> : vector<8x32xf32>
    %73 = tpu.matmul %70, %72, %cst_24 {dimension_numbers = #tpu.dot_dimension_numbers<[1], [0], [0], [1], [0, 0, 1, 1], [], []>} : vector<8x32xbf16>, vector<32x32xbf16>, vector<8x32xf32> -> vector<8x32xf32>
    %c0_25 = arith.constant 0 : index
    %c0_26 = arith.constant 0 : index
    %c0_27 = arith.constant 0 : index
    %74 = vector.load %arg5[%c0_25, %c0_26, %c0_27] : memref<1x1x32xf32, #tpu.memory_space<vmem>>, vector<1x1x32xf32>
    %75 = vector.shape_cast %74 : vector<1x1x32xf32> to vector<1x32xf32>
    %76 = vector.broadcast %75 : vector<1x32xf32> to vector<8x32xf32>
    %77 = arith.addf %73, %76 : vector<8x32xf32>
    %78 = arith.addf %3, %77 : vector<8x32xf32>
    %c0_28 = arith.constant 0 : index
    %c0_29 = arith.constant 0 : index
    %c0_30 = arith.constant 0 : index
    %79 = vector.load %arg10[%c0_28, %c0_29, %c0_30] : memref<1x1x32xf32, #tpu.memory_space<vmem>>, vector<1x1x32xf32>
    %80 = vector.shape_cast %79 : vector<1x1x32xf32> to vector<1x32xf32>
    %c0_31 = arith.constant 0 : index
    %c0_32 = arith.constant 0 : index
    %c0_33 = arith.constant 0 : index
    %81 = vector.load %arg11[%c0_31, %c0_32, %c0_33] : memref<1x1x32xf32, #tpu.memory_space<vmem>>, vector<1x1x32xf32>
    %82 = vector.shape_cast %81 : vector<1x1x32xf32> to vector<1x32xf32>
    %cst_34 = arith.constant dense<0.000000e+00> : vector<8xf32>
    %83 = vector.multi_reduction <add>, %78, %cst_34 [1] : vector<8x32xf32> to vector<8xf32>
    %84 = vector.shape_cast %83 : vector<8xf32> to vector<8x1xf32>
    %cst_35 = arith.constant 3.200000e+01 : f32
    %85 = vector.broadcast %cst_35 : f32 to vector<8x1xf32>
    %86 = arith.divf %84, %85 : vector<8x1xf32>
    %87 = vector.broadcast %86 : vector<8x1xf32> to vector<8x32xf32>
    %88 = arith.subf %78, %87 : vector<8x32xf32>
    %89 = arith.mulf %88, %88 : vector<8x32xf32>
    %cst_36 = arith.constant dense<0.000000e+00> : vector<8xf32>
    %90 = vector.multi_reduction <add>, %89, %cst_36 [1] : vector<8x32xf32> to vector<8xf32>
    %91 = vector.shape_cast %90 : vector<8xf32> to vector<8x1xf32>
    %cst_37 = arith.constant 3.200000e+01 : f32
    %92 = vector.broadcast %cst_37 : f32 to vector<8x1xf32>
    %93 = arith.divf %91, %92 : vector<8x1xf32>
    %94 = vector.broadcast %86 : vector<8x1xf32> to vector<8x32xf32>
    %95 = arith.subf %78, %94 : vector<8x32xf32>
    %cst_38 = arith.constant 9.99999974E-6 : f32
    %96 = vector.broadcast %cst_38 : f32 to vector<8x1xf32>
    %97 = arith.addf %93, %96 : vector<8x1xf32>
    %98 = math.rsqrt %97 : vector<8x1xf32>
    %99 = vector.broadcast %98 : vector<8x1xf32> to vector<8x32xf32>
    %100 = arith.mulf %95, %99 : vector<8x32xf32>
    %101 = vector.broadcast %80 : vector<1x32xf32> to vector<8x32xf32>
    %102 = arith.mulf %100, %101 : vector<8x32xf32>
    %103 = vector.broadcast %82 : vector<1x32xf32> to vector<8x32xf32>
    %104 = arith.addf %102, %103 : vector<8x32xf32>
    %105 = arith.truncf %104 : vector<8x32xf32> to vector<8x32xbf16>
    %c0_39 = arith.constant 0 : index
    %c0_40 = arith.constant 0 : index
    %c0_41 = arith.constant 0 : index
    %106 = vector.load %arg6[%c0_39, %c0_40, %c0_41] : memref<1x32x64xbf16, #tpu.memory_space<vmem>>, vector<1x32x64xbf16>
    %107 = vector.shape_cast %106 : vector<1x32x64xbf16> to vector<32x64xbf16>
    %cst_42 = arith.constant dense<0.000000e+00> : vector<8x64xf32>
    %108 = tpu.matmul %105, %107, %cst_42 {dimension_numbers = #tpu.dot_dimension_numbers<[1], [0], [0], [1], [0, 0, 1, 1], [], []>} : vector<8x32xbf16>, vector<32x64xbf16>, vector<8x64xf32> -> vector<8x64xf32>
    %c0_43 = arith.constant 0 : index
    %c0_44 = arith.constant 0 : index
    %c0_45 = arith.constant 0 : index
    %109 = vector.load %arg7[%c0_43, %c0_44, %c0_45] : memref<1x1x64xf32, #tpu.memory_space<vmem>>, vector<1x1x64xf32>
    %110 = vector.shape_cast %109 : vector<1x1x64xf32> to vector<1x64xf32>
    %111 = vector.broadcast %110 : vector<1x64xf32> to vector<8x64xf32>
    %112 = arith.addf %108, %111 : vector<8x64xf32>
    %cst_46 = arith.constant 0.000000e+00 : f32
    %113 = vector.broadcast %cst_46 : f32 to vector<8x64xf32>
    %114 = arith.maximumf %112, %113 : vector<8x64xf32>
    %115 = arith.truncf %114 : vector<8x64xf32> to vector<8x64xbf16>
    %c0_47 = arith.constant 0 : index
    %c0_48 = arith.constant 0 : index
    %c0_49 = arith.constant 0 : index
    %116 = vector.load %arg8[%c0_47, %c0_48, %c0_49] : memref<1x64x32xbf16, #tpu.memory_space<vmem>>, vector<1x64x32xbf16>
    %117 = vector.shape_cast %116 : vector<1x64x32xbf16> to vector<64x32xbf16>
    %cst_50 = arith.constant dense<0.000000e+00> : vector<8x32xf32>
    %118 = tpu.matmul %115, %117, %cst_50 {dimension_numbers = #tpu.dot_dimension_numbers<[1], [0], [0], [1], [0, 0, 1, 1], [], []>} : vector<8x64xbf16>, vector<64x32xbf16>, vector<8x32xf32> -> vector<8x32xf32>
    %c0_51 = arith.constant 0 : index
    %c0_52 = arith.constant 0 : index
    %c0_53 = arith.constant 0 : index
    %119 = vector.load %arg9[%c0_51, %c0_52, %c0_53] : memref<1x1x32xf32, #tpu.memory_space<vmem>>, vector<1x1x32xf32>
    %120 = vector.shape_cast %119 : vector<1x1x32xf32> to vector<1x32xf32>
    %121 = vector.broadcast %120 : vector<1x32xf32> to vector<8x32xf32>
    %122 = arith.addf %118, %121 : vector<8x32xf32>
    %123 = arith.addf %104, %122 : vector<8x32xf32>
    %c0_54 = arith.constant 0 : index
    %c0_55 = arith.constant 0 : index
    %c0_56 = arith.constant 0 : index
    %124 = vector.load %arg12[%c0_54, %c0_55, %c0_56] : memref<1x1x32xf32, #tpu.memory_space<vmem>>, vector<1x1x32xf32>
    %125 = vector.shape_cast %124 : vector<1x1x32xf32> to vector<1x32xf32>
    %c0_57 = arith.constant 0 : index
    %c0_58 = arith.constant 0 : index
    %c0_59 = arith.constant 0 : index
    %126 = vector.load %arg13[%c0_57, %c0_58, %c0_59] : memref<1x1x32xf32, #tpu.memory_space<vmem>>, vector<1x1x32xf32>
    %127 = vector.shape_cast %126 : vector<1x1x32xf32> to vector<1x32xf32>
    %cst_60 = arith.constant dense<0.000000e+00> : vector<8xf32>
    %128 = vector.multi_reduction <add>, %123, %cst_60 [1] : vector<8x32xf32> to vector<8xf32>
    %129 = vector.shape_cast %128 : vector<8xf32> to vector<8x1xf32>
    %cst_61 = arith.constant 3.200000e+01 : f32
    %130 = vector.broadcast %cst_61 : f32 to vector<8x1xf32>
    %131 = arith.divf %129, %130 : vector<8x1xf32>
    %132 = vector.broadcast %131 : vector<8x1xf32> to vector<8x32xf32>
    %133 = arith.subf %123, %132 : vector<8x32xf32>
    %134 = arith.mulf %133, %133 : vector<8x32xf32>
    %cst_62 = arith.constant dense<0.000000e+00> : vector<8xf32>
    %135 = vector.multi_reduction <add>, %134, %cst_62 [1] : vector<8x32xf32> to vector<8xf32>
    %136 = vector.shape_cast %135 : vector<8xf32> to vector<8x1xf32>
    %cst_63 = arith.constant 3.200000e+01 : f32
    %137 = vector.broadcast %cst_63 : f32 to vector<8x1xf32>
    %138 = arith.divf %136, %137 : vector<8x1xf32>
    %139 = vector.broadcast %131 : vector<8x1xf32> to vector<8x32xf32>
    %140 = arith.subf %123, %139 : vector<8x32xf32>
    %cst_64 = arith.constant 9.99999974E-6 : f32
    %141 = vector.broadcast %cst_64 : f32 to vector<8x1xf32>
    %142 = arith.addf %138, %141 : vector<8x1xf32>
    %143 = math.rsqrt %142 : vector<8x1xf32>
    %144 = vector.broadcast %143 : vector<8x1xf32> to vector<8x32xf32>
    %145 = arith.mulf %140, %144 : vector<8x32xf32>
    %146 = vector.broadcast %125 : vector<1x32xf32> to vector<8x32xf32>
    %147 = arith.mulf %145, %146 : vector<8x32xf32>
    %148 = vector.broadcast %127 : vector<1x32xf32> to vector<8x32xf32>
    %149 = arith.addf %147, %148 : vector<8x32xf32>
    %c0_65 = arith.constant 0 : index
    %c0_66 = arith.constant 0 : index
    %150 = vector.load %arg19[%c0_65, %c0_66] : memref<8x32xf32, #tpu.memory_space<vmem>>, vector<8x32xf32>
    tpu.vector_store %arg19[%c0_65, %c0_66], %149 {strides = array<i32>} : memref<8x32xf32, #tpu.memory_space<vmem>>, vector<8x32xf32>,
    %c1_i32 = arith.constant 1 : i32
    %151 = arith.cmpi eq, %arg1, %c1_i32 : i32
    %152 = arith.extui %151 : i1 to i32
    %c0_i32_67 = arith.constant 0 : i32
    %153 = arith.cmpi ne, %152, %c0_i32_67 : i32
    scf.if %153 {
      %c0_68 = arith.constant 0 : index
      %c0_69 = arith.constant 0 : index
      %154 = vector.load %arg14[%c0_68, %c0_69] : memref<1x32xf32, #tpu.memory_space<vmem>>, vector<1x32xf32>
      %c0_70 = arith.constant 0 : index
      %c0_71 = arith.constant 0 : index
      %155 = vector.load %arg15[%c0_70, %c0_71] : memref<1x32xf32, #tpu.memory_space<vmem>>, vector<1x32xf32>
      %cst_72 = arith.constant dense<0.000000e+00> : vector<8xf32>
      %156 = vector.multi_reduction <add>, %149, %cst_72 [1] : vector<8x32xf32> to vector<8xf32>
      %157 = vector.shape_cast %156 : vector<8xf32> to vector<8x1xf32>
      %cst_73 = arith.constant 3.200000e+01 : f32
      %158 = vector.broadcast %cst_73 : f32 to vector<8x1xf32>
      %159 = arith.divf %157, %158 : vector<8x1xf32>
      %160 = vector.broadcast %159 : vector<8x1xf32> to vector<8x32xf32>
      %161 = arith.subf %149, %160 : vector<8x32xf32>
      %162 = arith.mulf %161, %161 : vector<8x32xf32>
      %cst_74 = arith.constant dense<0.000000e+00> : vector<8xf32>
      %163 = vector.multi_reduction <add>, %162, %cst_74 [1] : vector<8x32xf32> to vector<8xf32>
      %164 = vector.shape_cast %163 : vector<8xf32> to vector<8x1xf32>
      %cst_75 = arith.constant 3.200000e+01 : f32
      %165 = vector.broadcast %cst_75 : f32 to vector<8x1xf32>
      %166 = arith.divf %164, %165 : vector<8x1xf32>
      %167 = vector.broadcast %159 : vector<8x1xf32> to vector<8x32xf32>
      %168 = arith.subf %149, %167 : vector<8x32xf32>
      %cst_76 = arith.constant 9.99999974E-6 : f32
      %169 = vector.broadcast %cst_76 : f32 to vector<8x1xf32>
      %170 = arith.addf %166, %169 : vector<8x1xf32>
      %171 = math.rsqrt %170 : vector<8x1xf32>
      %172 = vector.broadcast %171 : vector<8x1xf32> to vector<8x32xf32>
      %173 = arith.mulf %168, %172 : vector<8x32xf32>
      %174 = vector.broadcast %154 : vector<1x32xf32> to vector<8x32xf32>
      %175 = arith.mulf %173, %174 : vector<8x32xf32>
      %176 = vector.broadcast %155 : vector<1x32xf32> to vector<8x32xf32>
      %177 = arith.addf %175, %176 : vector<8x32xf32>
      %178 = arith.truncf %177 : vector<8x32xf32> to vector<8x32xbf16>
      %c0_77 = arith.constant 0 : index
      %c0_78 = arith.constant 0 : index
      %179 = vector.load %arg16[%c0_77, %c0_78] : memref<32x128xbf16, #tpu.memory_space<vmem>>, vector<32x128xbf16>
      %cst_79 = arith.constant dense<0.000000e+00> : vector<8x128xf32>
      %180 = tpu.matmul %178, %179, %cst_79 {dimension_numbers = #tpu.dot_dimension_numbers<[1], [0], [0], [1], [0, 0, 1, 1], [], []>} : vector<8x32xbf16>, vector<32x128xbf16>, vector<8x128xf32> -> vector<8x128xf32>
      %c0_80 = arith.constant 0 : index
      %c0_81 = arith.constant 0 : index
      %181 = vector.load %arg17[%c0_80, %c0_81] : memref<1x128xf32, #tpu.memory_space<vmem>>, vector<1x128xf32>
      %182 = vector.broadcast %181 : vector<1x128xf32> to vector<8x128xf32>
      %183 = arith.addf %180, %182 : vector<8x128xf32>
      %c0_82 = arith.constant 0 : index
      %c0_83 = arith.constant 0 : index
      %c0_84 = arith.constant 0 : index
      %184 = vector.load %arg18[%c0_82, %c0_83, %c0_84] : memref<1x8x128xf32, #tpu.memory_space<vmem>>, vector<1x8x128xf32>
      %185 = vector.shape_cast %184 : vector<1x8x128xf32> to vector<8x128xf32>
      %186 = vector.shape_cast %183 : vector<8x128xf32> to vector<1x8x128xf32>
      tpu.vector_store %arg18[%c0_82, %c0_83, %c0_84], %186 {strides = array<i32>} : memref<1x8x128xf32, #tpu.memory_space<vmem>>, vector<1x8x128xf32>,
    } else {
    }
    return
  }
  func.func @transform_0(%arg0: i32, %arg1: i32) -> (i32, i32, i32) {
    %c0_i32 = arith.constant 0 : i32
    %c0_i32_0 = arith.constant 0 : i32
    %c0_i32_1 = arith.constant 0 : i32
    return %arg0, %c0_i32, %c0_i32_0 : i32, i32, i32
  }
  func.func @transform_1(%arg0: i32, %arg1: i32) -> (i32, i32, i32) {
    %c0_i32 = arith.constant 0 : i32
    %c0_i32_0 = arith.constant 0 : i32
    %c0_i32_1 = arith.constant 0 : i32
    return %arg1, %c0_i32, %c0_i32_0 : i32, i32, i32
  }
  func.func @transform_2(%arg0: i32, %arg1: i32) -> (i32, i32, i32) {
    %c0_i32 = arith.constant 0 : i32
    %c0_i32_0 = arith.constant 0 : i32
    %c0_i32_1 = arith.constant 0 : i32
    return %arg1, %c0_i32, %c0_i32_0 : i32, i32, i32
  }
  func.func @transform_3(%arg0: i32, %arg1: i32) -> (i32, i32, i32) {
    %c0_i32 = arith.constant 0 : i32
    %c0_i32_0 = arith.constant 0 : i32
    %c0_i32_1 = arith.constant 0 : i32
    return %arg1, %c0_i32, %c0_i32_0 : i32, i32, i32
  }
  func.func @transform_4(%arg0: i32, %arg1: i32) -> (i32, i32, i32) {
    %c0_i32 = arith.constant 0 : i32
    %c0_i32_0 = arith.constant 0 : i32
    %c0_i32_1 = arith.constant 0 : i32
    return %arg1, %c0_i32, %c0_i32_0 : i32, i32, i32
  }
  func.func @transform_5(%arg0: i32, %arg1: i32) -> (i32, i32, i32) {
    %c0_i32 = arith.constant 0 : i32
    %c0_i32_0 = arith.constant 0 : i32
    %c0_i32_1 = arith.constant 0 : i32
    return %arg1, %c0_i32, %c0_i32_0 : i32, i32, i32
  }
  func.func @transform_6(%arg0: i32, %arg1: i32) -> (i32, i32, i32) {
    %c0_i32 = arith.constant 0 : i32
    %c0_i32_0 = arith.constant 0 : i32
    %c0_i32_1 = arith.constant 0 : i32
    return %arg1, %c0_i32, %c0_i32_0 : i32, i32, i32
  }
  func.func @transform_7(%arg0: i32, %arg1: i32) -> (i32, i32, i32) {
    %c0_i32 = arith.constant 0 : i32
    %c0_i32_0 = arith.constant 0 : i32
    %c0_i32_1 = arith.constant 0 : i32
    return %arg1, %c0_i32, %c0_i32_0 : i32, i32, i32
  }
  func.func @transform_8(%arg0: i32, %arg1: i32) -> (i32, i32, i32) {
    %c0_i32 = arith.constant 0 : i32
    %c0_i32_0 = arith.constant 0 : i32
    %c0_i32_1 = arith.constant 0 : i32
    return %arg1, %c0_i32, %c0_i32_0 : i32, i32, i32
  }
  func.func @transform_9(%arg0: i32, %arg1: i32) -> (i32, i32, i32) {
    %c0_i32 = arith.constant 0 : i32
    %c0_i32_0 = arith.constant 0 : i32
    %c0_i32_1 = arith.constant 0 : i32
    return %arg1, %c0_i32, %c0_i32_0 : i32, i32, i32
  }
  func.func @transform_10(%arg0: i32, %arg1: i32) -> (i32, i32, i32) {
    %c0_i32 = arith.constant 0 : i32
    %c0_i32_0 = arith.constant 0 : i32
    %c0_i32_1 = arith.constant 0 : i32
    return %arg1, %c0_i32, %c0_i32_0 : i32, i32, i32
  }
  func.func @transform_11(%arg0: i32, %arg1: i32) -> (i32, i32, i32) {
    %c0_i32 = arith.constant 0 : i32
    %c0_i32_0 = arith.constant 0 : i32
    %c0_i32_1 = arith.constant 0 : i32
    return %arg1, %c0_i32, %c0_i32_0 : i32, i32, i32
  }
  func.func @transform_12(%arg0: i32, %arg1: i32) -> (i32, i32) {
    %c0_i32 = arith.constant 0 : i32
    %c0_i32_0 = arith.constant 0 : i32
    %c0_i32_1 = arith.constant 0 : i32
    return %c0_i32, %c0_i32_0 : i32, i32
  }
  func.func @transform_13(%arg0: i32, %arg1: i32) -> (i32, i32) {
    %c0_i32 = arith.constant 0 : i32
    %c0_i32_0 = arith.constant 0 : i32
    %c0_i32_1 = arith.constant 0 : i32
    return %c0_i32, %c0_i32_0 : i32, i32
  }
  func.func @transform_14(%arg0: i32, %arg1: i32) -> (i32, i32) {
    %c0_i32 = arith.constant 0 : i32
    %c0_i32_0 = arith.constant 0 : i32
    %c0_i32_1 = arith.constant 0 : i32
    return %c0_i32, %c0_i32_0 : i32, i32
  }
  func.func @transform_15(%arg0: i32, %arg1: i32) -> (i32, i32) {
    %c0_i32 = arith.constant 0 : i32
    %c0_i32_0 = arith.constant 0 : i32
    %c0_i32_1 = arith.constant 0 : i32
    return %c0_i32, %c0_i32_0 : i32, i32
  }
  func.func @transform_16(%arg0: i32, %arg1: i32) -> (i32, i32, i32) {
    %c0_i32 = arith.constant 0 : i32
    %c0_i32_0 = arith.constant 0 : i32
    %c0_i32_1 = arith.constant 0 : i32
    return %arg0, %c0_i32, %c0_i32_0 : i32, i32, i32
  }
}

</mosaic_0001>

<llo_original>
// kernel: tpu_custom_call.1
$region0: #{tpu_custom_call.1}
  #allocation0 [shape = 'u32[]', space=smem, size = 0x4, offset = 0x4, fixed_abs, tag = 'smem constant byte address 0x4 - core index']
  #allocation1 [shape = 'u32[144,128]{1,0:T(1,128)}', space=vmem, size = 0x12000, scoped, tag = 'internal scratch']
  #allocation2 [shape = 'f32[8,32]{1,0:T(8,128)}', space=vmem, size = 0x1000, scoped, tag = 'scratch operand']
  %s0 = inlined_call_operand.hbm [shape: f32[2,8,32], index: 0, kind: input, shape index: {}]
  %s1 = inlined_call_operand.vmem [shape: bf16[2,32,128], index: 1, kind: input, shape index: {}]
  %s2 = inlined_call_operand.vmem [shape: bf16[2,32,32], index: 2, kind: input, shape index: {}]
  %s3 = inlined_call_operand.hbm [shape: f32[2,1,32], index: 3, kind: input, shape index: {}]
  %s4 = inlined_call_operand.vmem [shape: bf16[2,32,64], index: 4, kind: input, shape index: {}]
  %s5 = inlined_call_operand.hbm [shape: f32[2,1,64], index: 5, kind: input, shape index: {}]
  %s6 = inlined_call_operand.vmem [shape: bf16[2,64,32], index: 6, kind: input, shape index: {}]
  %s7 = inlined_call_operand.hbm [shape: f32[2,1,32], index: 7, kind: input, shape index: {}]
  %s8 = inlined_call_operand.hbm [shape: f32[2,1,32], index: 8, kind: input, shape index: {}]
  %s9 = inlined_call_operand.hbm [shape: f32[2,1,32], index: 9, kind: input, shape index: {}]
  %s10 = inlined_call_operand.vmem [shape: f32[2,1,32], index: 10, kind: input, shape index: {}]
  %s11 = inlined_call_operand.vmem [shape: f32[2,1,32], index: 11, kind: input, shape index: {}]
  %s12 = inlined_call_operand.vmem [shape: f32[1,32], index: 12, kind: input, shape index: {}]
  %s13 = inlined_call_operand.vmem [shape: f32[1,32], index: 13, kind: input, shape index: {}]
  %s14 = inlined_call_operand.vmem [shape: bf16[32,128], index: 14, kind: input, shape index: {}]
  %s15 = inlined_call_operand.vmem [shape: f32[1,128], index: 15, kind: input, shape index: {}]
  %s16 = inlined_call_operand.hbm [shape: f32[2,8,128], index: 16, kind: output, shape index: {}]
  %s17 = sld [smem:[#allocation0]]
  $region129: #{tpu_custom_call.1} parent=0
    _
  %s19 = ssub.s32 1, %s17
  %s20 = scalar_select 0, %s19, %s17
  $region1: #{tpu_custom_call.1} parent=0
    #allocation3 [shape = 'u8[8192]{0}', space=vmem, size = 0x2000, scoped, tag = 'input window, operand 0']
    #allocation4 [shape = 's32[2]{0}', space=sflag, size = 0x8, scoped, tag = 'scoped memory for tpu_custom_call.1']
    #allocation5 [shape = 's32[2]{0}', space=sflag, size = 0x8, scoped, tag = 'scoped memory for tpu_custom_call.1']
    #allocation6 [shape = 'u8[1024]{0}', space=vmem, size = 0x400, scoped, tag = 'input window, operand 3']
    #allocation7 [shape = 's32[2]{0}', space=sflag, size = 0x8, scoped, tag = 'scoped memory for tpu_custom_call.1']
    #allocation8 [shape = 'u8[1024]{0}', space=vmem, size = 0x400, scoped, tag = 'input window, operand 5']
    #allocation9 [shape = 'u8[1024]{0}', space=vmem, size = 0x400, scoped, tag = 'input window, operand 7']
    #allocation10 [shape = 's32[2]{0}', space=sflag, size = 0x8, scoped, tag = 'scoped memory for tpu_custom_call.1']
    #allocation11 [shape = 'u8[1024]{0}', space=vmem, size = 0x400, scoped, tag = 'input window, operand 8']
    #allocation12 [shape = 'u8[1024]{0}', space=vmem, size = 0x400, scoped, tag = 'input window, operand 9']
    #allocation13 [shape = 's32[2]{0}', space=sflag, size = 0x8, scoped, tag = 'scoped memory for tpu_custom_call.1']
    #allocation14 [shape = 'u8[8192]{0}', space=vmem, size = 0x2000, scoped, tag = 'output window, operand 0']
    %21 = vsyncpa [#allocation4], 0
    %s22 = scalar_lea.sflag [#allocation4], 1
    %23 = vsyncpa %s22, 0
    %24 = vsyncpa [#allocation7], 0
    %s25 = scalar_lea.sflag [#allocation7], 1
    %26 = vsyncpa %s25, 0
    %27 = vsyncpa [#allocation10], 0
    %s28 = scalar_lea.sflag [#allocation10], 1
    %29 = vsyncpa %s28, 0
    %30 = vsyncpa [#allocation13], 0
    %s31 = scalar_lea.sflag [#allocation13], 1
    %32 = vsyncpa %s31, 0
    %33 = vsyncpa [#allocation5], 0
    %s34 = scalar_lea.sflag [#allocation5], 1
    %35 = vsyncpa %s34, 0
    loop: start=0, step=1, limit=6
    $region2: #{tpu_custom_call.1} parent=1 // loop_pre_header
      _
    $region3: #{tpu_custom_call.1} parent=1 // loop_header
      %s37 = sphi 0, %s41
      %p38 = scmp.ge.s32.totalorder %s37, 6
      %s44 = sphi 0, %s56
      %s45 = sphi 0, %s52
      %s46 = sphi 0, %s44
      %s47 = sphi 0, %s45
      %s48 = sphi 0, %s46
      %s49 = sphi 0, %s47
      %s59 = sphi 0, %s61
      %s62 = sphi 0, %s59
      %s63 = sphi 0, %s62
      %s79 = sphi 0, %s63
      %s85 = sphi 0, %s87
      %s88 = sphi 0, %s85
      %s89 = sphi 0, %s88
      %s105 = sphi 0, %s89
      %s111 = sphi 0, %s113
      %s114 = sphi 0, %s111
      %s115 = sphi 0, %s114
      %s131 = sphi 0, %s115
      %s137 = sphi 0, %s139
      %s140 = sphi 0, %s137
      %s141 = sphi 0, %s140
      %s157 = sphi 0, %s141
      %s163 = sphi 0, %s165
      %s166 = sphi 0, %s163
      %s167 = sphi 0, %s166
      %s183 = sphi 0, %s167
      %s189 = sphi 0, %s191
      %s192 = sphi 0, %s189
      %s193 = sphi 0, %s192
      %s209 = sphi 0, %s193
      %s215 = sphi 0, %s217
      %s218 = sphi 0, %s215
      %s219 = sphi 0, %s218
      %s235 = sphi 0, %s219
      %s241 = sphi 0, %s243
      %s244 = sphi 0, %s241
      %s245 = sphi 0, %s244
      %s261 = sphi 0, %s245
      %s267 = sphi 0, %s269
      %s270 = sphi 0, %s267
      %s271 = sphi 0, %s270
      %s287 = sphi 0, %s271
      %s293 = sphi 0, %s295
      %s296 = sphi 0, %s293
      %s297 = sphi 0, %s296
      %s313 = sphi 0, %s297
      %s319 = sphi 0, %s321
      %s322 = sphi 0, %s319
      %s323 = sphi 0, %s322
      %s339 = sphi 0, %s323
      %s345 = sphi 0, %s347
      %s348 = sphi 0, %s345
      %s349 = sphi 0, %s348
      %s365 = sphi 0, %s349
      %s369 = sphi 0, %s369
      %s371 = sphi 0, %s369
      %s372 = sphi 0, %s371
      %s386 = sphi 0, %s372
      %s390 = sphi 0, %s390
      %s392 = sphi 0, %s390
      %s393 = sphi 0, %s392
      %s407 = sphi 0, %s393
      %s411 = sphi 0, %s411
      %s413 = sphi 0, %s411
      %s414 = sphi 0, %s413
      %s428 = sphi 0, %s414
      %s432 = sphi 0, %s432
      %s434 = sphi 0, %s432
      %s435 = sphi 0, %s434
      %s449 = sphi 0, %s435
      %s455 = sphi 0, %s457
      %s458 = sphi 0, %s455
      %s459 = sphi 0, %s458
      %s475 = sphi 0, %s459
    $region4: #{tpu_custom_call.1} parent=1 // loop_header_branch
      %40 = sbr.rel (%p38) target = $region8
    $region5: #{tpu_custom_call.1} parent=1 // loop_body
      %s42 = ssub.s32 %s37, 1
      %s43 = ssub.s32 %s37, 2
      %s50 = sadd.s32 1, %s45
      %p51 = scmp.ge.s32.totalorder %s50, 2
      %s52 = scalar_select %p51, 0, %s50
      %s53 = sadd.s32 1, %s44
      %s54 = scalar_select %p51, %s53, %s44
      %p55 = scmp.ge.s32.totalorder %s54, 2
      %s56 = scalar_select %p55, 0, %s54
      %s57 = ssub.s32 %s44, %s56
      %p58 = scmp.eq.s32.totalorder %s57, 0
      %s60 = sadd.s32 %s59, 1
      %s61 = scalar_select %p58, %s59, %s60
      %p64 = pneg %p58
      %p65 = scmp.eq.s32.totalorder %s37, 3
      %p66 = por %p64, %p65
      %p67 = scmp.ne.s32.totalorder %s59, %s62
      %p68 = scmp.eq.s32.totalorder %s37, 0
      %p69 = por %p67, %p68
      %p70 = scmp.ne.s32.totalorder %s59, %s62
      %p71 = scmp.eq.s32.totalorder %s42, 3
      %p72 = por %p70, %p71
      %p73 = scmp.ne.s32.totalorder %s62, %s63
      %p74 = scmp.eq.s32.totalorder %s42, 0
      %p75 = por %p73, %p74
      %p76 = scmp.ne.s32.totalorder %s62, %s63
      %p77 = scmp.eq.s32.totalorder %s43, 3
      %p78 = por %p76, %p77
      %p80 = scmp.ne.s32.totalorder %s63, %s79
      %p81 = scmp.eq.s32.totalorder %s43, 0
      %p82 = por %p80, %p81
      %s83 = ssub.s32 %s45, %s52
      %p84 = scmp.eq.s32.totalorder %s83, 0
      %s86 = sadd.s32 %s85, 1
      %s87 = scalar_select %p84, %s85, %s86
      %p90 = pneg %p84
      %p91 = scmp.eq.s32.totalorder %s37, 3
      %p92 = por %p90, %p91
      %p93 = scmp.ne.s32.totalorder %s85, %s88
      %p94 = scmp.eq.s32.totalorder %s37, 0
      %p95 = por %p93, %p94
      %p96 = scmp.ne.s32.totalorder %s85, %s88
      %p97 = scmp.eq.s32.totalorder %s42, 3
      %p98 = por %p96, %p97
      %p99 = scmp.ne.s32.totalorder %s88, %s89
      %p100 = scmp.eq.s32.totalorder %s42, 0
      %p101 = por %p99, %p100
      %p102 = scmp.ne.s32.totalorder %s88, %s89
      %p103 = scmp.eq.s32.totalorder %s43, 3
      %p104 = por %p102, %p103
      %p106 = scmp.ne.s32.totalorder %s89, %s105
      %p107 = scmp.eq.s32.totalorder %s43, 0
      %p108 = por %p106, %p107
      %s109 = ssub.s32 %s45, %s52
      %p110 = scmp.eq.s32.totalorder %s109, 0
      %s112 = sadd.s32 %s111, 1
      %s113 = scalar_select %p110, %s111, %s112
      %p116 = pneg %p110
      %p117 = scmp.eq.s32.totalorder %s37, 3
      %p118 = por %p116, %p117
      %p119 = scmp.ne.s32.totalorder %s111, %s114
      %p120 = scmp.eq.s32.totalorder %s37, 0
      %p121 = por %p119, %p120
      %p122 = scmp.ne.s32.totalorder %s111, %s114
      %p123 = scmp.eq.s32.totalorder %s42, 3
      %p124 = por %p122, %p123
      %p125 = scmp.ne.s32.totalorder %s114, %s115
      %p126 = scmp.eq.s32.totalorder %s42, 0
      %p127 = por %p125, %p126
      %p128 = scmp.ne.s32.totalorder %s114, %s115
      %p129 = scmp.eq.s32.totalorder %s43, 3
      %p130 = por %p128, %p129
      %p132 = scmp.ne.s32.totalorder %s115, %s131
      %p133 = scmp.eq.s32.totalorder %s43, 0
      %p134 = por %p132, %p133
      %s135 = ssub.s32 %s45, %s52
      %p136 = scmp.eq.s32.totalorder %s135, 0
      %s138 = sadd.s32 %s137, 1
      %s139 = scalar_select %p136, %s137, %s138
      %p142 = pneg %p136
      %p143 = scmp.eq.s32.totalorder %s37, 3
      %p144 = por %p142, %p143
      %p145 = scmp.ne.s32.totalorder %s137, %s140
      %p146 = scmp.eq.s32.totalorder %s37, 0
      %p147 = por %p145, %p146
      %p148 = scmp.ne.s32.totalorder %s137, %s140
      %p149 = scmp.eq.s32.totalorder %s42, 3
      %p150 = por %p148, %p149
      %p151 = scmp.ne.s32.totalorder %s140, %s141
      %p152 = scmp.eq.s32.totalorder %s42, 0
      %p153 = por %p151, %p152
      %p154 = scmp.ne.s32.totalorder %s140, %s141
      %p155 = scmp.eq.s32.totalorder %s43, 3
      %p156 = por %p154, %p155
      %p158 = scmp.ne.s32.totalorder %s141, %s157
      %p159 = scmp.eq.s32.totalorder %s43, 0
      %p160 = por %p158, %p159
      %s161 = ssub.s32 %s45, %s52
      %p162 = scmp.eq.s32.totalorder %s161, 0
      %s164 = sadd.s32 %s163, 1
      %s165 = scalar_select %p162, %s163, %s164
      %p168 = pneg %p162
      %p169 = scmp.eq.s32.totalorder %s37, 3
      %p170 = por %p168, %p169
      %p171 = scmp.ne.s32.totalorder %s163, %s166
      %p172 = scmp.eq.s32.totalorder %s37, 0
      %p173 = por %p171, %p172
      %p174 = scmp.ne.s32.totalorder %s163, %s166
      %p175 = scmp.eq.s32.totalorder %s42, 3
      %p176 = por %p174, %p175
      %p177 = scmp.ne.s32.totalorder %s166, %s167
      %p178 = scmp.eq.s32.totalorder %s42, 0
      %p179 = por %p177, %p178
      %p180 = scmp.ne.s32.totalorder %s166, %s167
      %p181 = scmp.eq.s32.totalorder %s43, 3
      %p182 = por %p180, %p181
      %p184 = scmp.ne.s32.totalorder %s167, %s183
      %p185 = scmp.eq.s32.totalorder %s43, 0
      %p186 = por %p184, %p185
      %s187 = ssub.s32 %s45, %s52
      %p188 = scmp.eq.s32.totalorder %s187, 0
      %s190 = sadd.s32 %s189, 1
      %s191 = scalar_select %p188, %s189, %s190
      %p194 = pneg %p188
      %p195 = scmp.eq.s32.totalorder %s37, 3
      %p196 = por %p194, %p195
      %p197 = scmp.ne.s32.totalorder %s189, %s192
      %p198 = scmp.eq.s32.totalorder %s37, 0
      %p199 = por %p197, %p198
      %p200 = scmp.ne.s32.totalorder %s189, %s192
      %p201 = scmp.eq.s32.totalorder %s42, 3
      %p202 = por %p200, %p201
      %p203 = scmp.ne.s32.totalorder %s192, %s193
      %p204 = scmp.eq.s32.totalorder %s42, 0
      %p205 = por %p203, %p204
      %p206 = scmp.ne.s32.totalorder %s192, %s193
      %p207 = scmp.eq.s32.totalorder %s43, 3
      %p208 = por %p206, %p207
      %p210 = scmp.ne.s32.totalorder %s193, %s209
      %p211 = scmp.eq.s32.totalorder %s43, 0
      %p212 = por %p210, %p211
      %s213 = ssub.s32 %s45, %s52
      %p214 = scmp.eq.s32.totalorder %s213, 0
      %s216 = sadd.s32 %s215, 1
      %s217 = scalar_select %p214, %s215, %s216
      %p220 = pneg %p214
      %p221 = scmp.eq.s32.totalorder %s37, 3
      %p222 = por %p220, %p221
      %p223 = scmp.ne.s32.totalorder %s215, %s218
      %p224 = scmp.eq.s32.totalorder %s37, 0
      %p225 = por %p223, %p224
      %p226 = scmp.ne.s32.totalorder %s215, %s218
      %p227 = scmp.eq.s32.totalorder %s42, 3
      %p228 = por %p226, %p227
      %p229 = scmp.ne.s32.totalorder %s218, %s219
      %p230 = scmp.eq.s32.totalorder %s42, 0
      %p231 = por %p229, %p230
      %p232 = scmp.ne.s32.totalorder %s218, %s219
      %p233 = scmp.eq.s32.totalorder %s43, 3
      %p234 = por %p232, %p233
      %p236 = scmp.ne.s32.totalorder %s219, %s235
      %p237 = scmp.eq.s32.totalorder %s43, 0
      %p238 = por %p236, %p237
      %s239 = ssub.s32 %s45, %s52
      %p240 = scmp.eq.s32.totalorder %s239, 0
      %s242 = sadd.s32 %s241, 1
      %s243 = scalar_select %p240, %s241, %s242
      %p246 = pneg %p240
      %p247 = scmp.eq.s32.totalorder %s37, 3
      %p248 = por %p246, %p247
      %p249 = scmp.ne.s32.totalorder %s241, %s244
      %p250 = scmp.eq.s32.totalorder %s37, 0
      %p251 = por %p249, %p250
      %p252 = scmp.ne.s32.totalorder %s241, %s244
      %p253 = scmp.eq.s32.totalorder %s42, 3
      %p254 = por %p252, %p253
      %p255 = scmp.ne.s32.totalorder %s244, %s245
      %p256 = scmp.eq.s32.totalorder %s42, 0
      %p257 = por %p255, %p256
      %p258 = scmp.ne.s32.totalorder %s244, %s245
      %p259 = scmp.eq.s32.totalorder %s43, 3
      %p260 = por %p258, %p259
      %p262 = scmp.ne.s32.totalorder %s245, %s261
      %p263 = scmp.eq.s32.totalorder %s43, 0
      %p264 = por %p262, %p263
      %s265 = ssub.s32 %s45, %s52
      %p266 = scmp.eq.s32.totalorder %s265, 0
      %s268 = sadd.s32 %s267, 1
      %s269 = scalar_select %p266, %s267, %s268
      %p272 = pneg %p266
      %p273 = scmp.eq.s32.totalorder %s37, 3
      %p274 = por %p272, %p273
      %p275 = scmp.ne.s32.totalorder %s267, %s270
      %p276 = scmp.eq.s32.totalorder %s37, 0
      %p277 = por %p275, %p276
      %p278 = scmp.ne.s32.totalorder %s267, %s270
      %p279 = scmp.eq.s32.totalorder %s42, 3
      %p280 = por %p278, %p279
      %p281 = scmp.ne.s32.totalorder %s270, %s271
      %p282 = scmp.eq.s32.totalorder %s42, 0
      %p283 = por %p281, %p282
      %p284 = scmp.ne.s32.totalorder %s270, %s271
      %p285 = scmp.eq.s32.totalorder %s43, 3
      %p286 = por %p284, %p285
      %p288 = scmp.ne.s32.totalorder %s271, %s287
      %p289 = scmp.eq.s32.totalorder %s43, 0
      %p290 = por %p288, %p289
      %s291 = ssub.s32 %s45, %s52
      %p292 = scmp.eq.s32.totalorder %s291, 0
      %s294 = sadd.s32 %s293, 1
      %s295 = scalar_select %p292, %s293, %s294
      %p298 = pneg %p292
      %p299 = scmp.eq.s32.totalorder %s37, 3
      %p300 = por %p298, %p299
      %p301 = scmp.ne.s32.totalorder %s293, %s296
      %p302 = scmp.eq.s32.totalorder %s37, 0
      %p303 = por %p301, %p302
      %p304 = scmp.ne.s32.totalorder %s293, %s296
      %p305 = scmp.eq.s32.totalorder %s42, 3
      %p306 = por %p304, %p305
      %p307 = scmp.ne.s32.totalorder %s296, %s297
      %p308 = scmp.eq.s32.totalorder %s42, 0
      %p309 = por %p307, %p308
      %p310 = scmp.ne.s32.totalorder %s296, %s297
      %p311 = scmp.eq.s32.totalorder %s43, 3
      %p312 = por %p310, %p311
      %p314 = scmp.ne.s32.totalorder %s297, %s313
      %p315 = scmp.eq.s32.totalorder %s43, 0
      %p316 = por %p314, %p315
      %s317 = ssub.s32 %s45, %s52
      %p318 = scmp.eq.s32.totalorder %s317, 0
      %s320 = sadd.s32 %s319, 1
      %s321 = scalar_select %p318, %s319, %s320
      %p324 = pneg %p318
      %p325 = scmp.eq.s32.totalorder %s37, 3
      %p326 = por %p324, %p325
      %p327 = scmp.ne.s32.totalorder %s319, %s322
      %p328 = scmp.eq.s32.totalorder %s37, 0
      %p329 = por %p327, %p328
      %p330 = scmp.ne.s32.totalorder %s319, %s322
      %p331 = scmp.eq.s32.totalorder %s42, 3
      %p332 = por %p330, %p331
      %p333 = scmp.ne.s32.totalorder %s322, %s323
      %p334 = scmp.eq.s32.totalorder %s42, 0
      %p335 = por %p333, %p334
      %p336 = scmp.ne.s32.totalorder %s322, %s323
      %p337 = scmp.eq.s32.totalorder %s43, 3
      %p338 = por %p336, %p337
      %p340 = scmp.ne.s32.totalorder %s323, %s339
      %p341 = scmp.eq.s32.totalorder %s43, 0
      %p342 = por %p340, %p341
      %s343 = ssub.s32 %s45, %s52
      %p344 = scmp.eq.s32.totalorder %s343, 0
      %s346 = sadd.s32 %s345, 1
      %s347 = scalar_select %p344, %s345, %s346
      %p350 = pneg %p344
      %p351 = scmp.eq.s32.totalorder %s37, 3
      %p352 = por %p350, %p351
      %p353 = scmp.ne.s32.totalorder %s345, %s348
      %p354 = scmp.eq.s32.totalorder %s37, 0
      %p355 = por %p353, %p354
      %p356 = scmp.ne.s32.totalorder %s345, %s348
      %p357 = scmp.eq.s32.totalorder %s42, 3
      %p358 = por %p356, %p357
      %p359 = scmp.ne.s32.totalorder %s348, %s349
      %p360 = scmp.eq.s32.totalorder %s42, 0
      %p361 = por %p359, %p360
      %p362 = scmp.ne.s32.totalorder %s348, %s349
      %p363 = scmp.eq.s32.totalorder %s43, 3
      %p364 = por %p362, %p363
      %p366 = scmp.ne.s32.totalorder %s349, %s365
      %p367 = scmp.eq.s32.totalorder %s43, 0
      %p368 = por %p366, %p367
      %s370 = sadd.s32 %s369, 1
      %p373 = scmp.eq.s32.totalorder %s37, 3
      %p374 = scmp.ne.s32.totalorder %s369, %s371
      %p375 = scmp.eq.s32.totalorder %s37, 0
      %p376 = por %p374, %p375
      %p377 = scmp.ne.s32.totalorder %s369, %s371
      %p378 = scmp.eq.s32.totalorder %s42, 3
      %p379 = por %p377, %p378
      %p380 = scmp.ne.s32.totalorder %s371, %s372
      %p381 = scmp.eq.s32.totalorder %s42, 0
      %p382 = por %p380, %p381
      %p383 = scmp.ne.s32.totalorder %s371, %s372
      %p384 = scmp.eq.s32.totalorder %s43, 3
      %p385 = por %p383, %p384
      %p387 = scmp.ne.s32.totalorder %s372, %s386
      %p388 = scmp.eq.s32.totalorder %s43, 0
      %p389 = por %p387, %p388
      %s391 = sadd.s32 %s390, 1
      %p394 = scmp.eq.s32.totalorder %s37, 3
      %p395 = scmp.ne.s32.totalorder %s390, %s392
      %p396 = scmp.eq.s32.totalorder %s37, 0
      %p397 = por %p395, %p396
      %p398 = scmp.ne.s32.totalorder %s390, %s392
      %p399 = scmp.eq.s32.totalorder %s42, 3
      %p400 = por %p398, %p399
      %p401 = scmp.ne.s32.totalorder %s392, %s393
      %p402 = scmp.eq.s32.totalorder %s42, 0
      %p403 = por %p401, %p402
      %p404 = scmp.ne.s32.totalorder %s392, %s393
      %p405 = scmp.eq.s32.totalorder %s43, 3
      %p406 = por %p404, %p405
      %p408 = scmp.ne.s32.totalorder %s393, %s407
      %p409 = scmp.eq.s32.totalorder %s43, 0
      %p410 = por %p408, %p409
      %s412 = sadd.s32 %s411, 1
      %p415 = scmp.eq.s32.totalorder %s37, 3
      %p416 = scmp.ne.s32.totalorder %s411, %s413
      %p417 = scmp.eq.s32.totalorder %s37, 0
      %p418 = por %p416, %p417
      %p419 = scmp.ne.s32.totalorder %s411, %s413
      %p420 = scmp.eq.s32.totalorder %s42, 3
      %p421 = por %p419, %p420
      %p422 = scmp.ne.s32.totalorder %s413, %s414
      %p423 = scmp.eq.s32.totalorder %s42, 0
      %p424 = por %p422, %p423
      %p425 = scmp.ne.s32.totalorder %s413, %s414
      %p426 = scmp.eq.s32.totalorder %s43, 3
      %p427 = por %p425, %p426
      %p429 = scmp.ne.s32.totalorder %s414, %s428
      %p430 = scmp.eq.s32.totalorder %s43, 0
      %p431 = por %p429, %p430
      %s433 = sadd.s32 %s432, 1
      %p436 = scmp.eq.s32.totalorder %s37, 3
      %p437 = scmp.ne.s32.totalorder %s432, %s434
      %p438 = scmp.eq.s32.totalorder %s37, 0
      %p439 = por %p437, %p438
      %p440 = scmp.ne.s32.totalorder %s432, %s434
      %p441 = scmp.eq.s32.totalorder %s42, 3
      %p442 = por %p440, %p441
      %p443 = scmp.ne.s32.totalorder %s434, %s435
      %p444 = scmp.eq.s32.totalorder %s42, 0
      %p445 = por %p443, %p444
      %p446 = scmp.ne.s32.totalorder %s434, %s435
      %p447 = scmp.eq.s32.totalorder %s43, 3
      %p448 = por %p446, %p447
      %p450 = scmp.ne.s32.totalorder %s435, %s449
      %p451 = scmp.eq.s32.totalorder %s43, 0
      %p452 = por %p450, %p451
      %s453 = ssub.s32 %s44, %s56
      %p454 = scmp.eq.s32.totalorder %s453, 0
      %s456 = sadd.s32 %s455, 1
      %s457 = scalar_select %p454, %s455, %s456
      %p460 = pneg %p454
      %p461 = scmp.eq.s32.totalorder %s37, 3
      %p462 = por %p460, %p461
      %p463 = scmp.ne.s32.totalorder %s455, %s458
      %p464 = scmp.eq.s32.totalorder %s37, 0
      %p465 = por %p463, %p464
      %p466 = scmp.ne.s32.totalorder %s455, %s458
      %p467 = scmp.eq.s32.totalorder %s42, 3
      %p468 = por %p466, %p467
      %p469 = scmp.ne.s32.totalorder %s458, %s459
      %p470 = scmp.eq.s32.totalorder %s42, 0
      %p471 = por %p469, %p470
      %p472 = scmp.ne.s32.totalorder %s458, %s459
      %p473 = scmp.eq.s32.totalorder %s43, 3
      %p474 = por %p472, %p473
      %p476 = scmp.ne.s32.totalorder %s459, %s475
      %p477 = scmp.eq.s32.totalorder %s43, 0
      %p478 = por %p476, %p477
      %p479 = scmp.le.s32.totalorder 1, %s37
      %p480 = scmp.lt.s32.totalorder %s37, 5
      %p481 = pnand %p479, %p480
      %p482 = pneg %p481
      // Predicated region
      $region9: #{tpu_custom_call.1} parent=5 // pred_check
        _
      $region10: #{tpu_custom_call.1} parent=5 // pred_check_branch
        %484 = sbr.rel (%p481) target = $region12
      $region11: #{tpu_custom_call.1} parent=5 // pred_region
        %s485 = ssub.s32 %s37, 1
        // Predicated region
        $region13: #{tpu_custom_call.1} parent=11 // pred_check
          %p486 = pneg %p382
        $region14: #{tpu_custom_call.1} parent=11 // pred_check_branch
          %488 = sbr.rel (%p486) target = $region16
        $region15: #{tpu_custom_call.1} parent=11 // pred_region
          _
        $region16: #{tpu_custom_call.1} parent=11 // pred_fallthru
          _
        // Predicated region
        $region17: #{tpu_custom_call.1} parent=11 // pred_check
          %p489 = pneg %p403
        $region18: #{tpu_custom_call.1} parent=11 // pred_check_branch
          %491 = sbr.rel (%p489) target = $region20
        $region19: #{tpu_custom_call.1} parent=11 // pred_region
          _
        $region20: #{tpu_custom_call.1} parent=11 // pred_fallthru
          _
        // Predicated region
        $region21: #{tpu_custom_call.1} parent=11 // pred_check
          %p492 = pneg %p424
        $region22: #{tpu_custom_call.1} parent=11 // pred_check_branch
          %494 = sbr.rel (%p492) target = $region24
        $region23: #{tpu_custom_call.1} parent=11 // pred_region
          _
        $region24: #{tpu_custom_call.1} parent=11 // pred_fallthru
          _
        // Predicated region
        $region25: #{tpu_custom_call.1} parent=11 // pred_check
          %p495 = pneg %p445
        $region26: #{tpu_custom_call.1} parent=11 // pred_check_branch
          %497 = sbr.rel (%p495) target = $region28
        $region27: #{tpu_custom_call.1} parent=11 // pred_region
          _
        $region28: #{tpu_custom_call.1} parent=11 // pred_fallthru
          _
      $region12: #{tpu_custom_call.1} parent=5 // pred_fallthru
        _
      %p498 = scmp.lt.s32.totalorder %s37, 4
      // Predicated region
      $region29: #{tpu_custom_call.1} parent=5 // pred_check
        %p499 = pneg %p498
      $region30: #{tpu_custom_call.1} parent=5 // pred_check_branch
        %501 = sbr.rel (%p499) target = $region32
      $region31: #{tpu_custom_call.1} parent=5 // pred_region
        // Predicated region
        $region33: #{tpu_custom_call.1} parent=31 // pred_check
          %p502 = pneg %p69
        $region34: #{tpu_custom_call.1} parent=31 // pred_check_branch
          %504 = sbr.rel (%p502) target = $region36
        $region35: #{tpu_custom_call.1} parent=31 // pred_region
          %s505 = sand.u32 %s59, 1
          %s506 = scalar_lea.sflag [#allocation4], %s505
          %s507 = sand.u32 %s59, 1
          %s508 = smul.addr %s507, 8
          %s509 = scalar_lea.vmem [#allocation3], %s508
          %s511 = ssub.s32 128, 128
          %512 = vsyncadd %s506, %s511
          %s513 = smul.addr %s44, 128
          %s514 = scalar_lea.hbm %s0, %s513
          %s516 = sshll.u32 %s509, 4
          %s517 = int_to_ptr.vmem [resolvable:$true] %s516
          %519 = dma.hbm_to_vmem [thread:$0]  %s514, 128, %s517, %s506
        $region36: #{tpu_custom_call.1} parent=31 // pred_fallthru
          _
        // Predicated region
        $region37: #{tpu_custom_call.1} parent=31 // pred_check
          %p520 = pneg %p95
        $region38: #{tpu_custom_call.1} parent=31 // pred_check_branch
          %522 = sbr.rel (%p520) target = $region40
        $region39: #{tpu_custom_call.1} parent=31 // pred_region
          %p523 = scmp.lt.s32.totalorder %s45, 1
          %s524 = scalar_select %p523, %s45, 1
          %s525 = smul.addr %s524, 4
          %s526 = smul.addr %s525, 4
          %s527 = scalar_lea.vmem %s1, %s526
        $region40: #{tpu_custom_call.1} parent=31 // pred_fallthru
          _
        // Predicated region
        $region41: #{tpu_custom_call.1} parent=31 // pred_check
          %p528 = pneg %p121
        $region42: #{tpu_custom_call.1} parent=31 // pred_check_branch
          %530 = sbr.rel (%p528) target = $region44
        $region43: #{tpu_custom_call.1} parent=31 // pred_region
          %p531 = scmp.lt.s32.totalorder %s45, 1
          %s532 = scalar_select %p531, %s45, 1
          %s533 = smul.addr %s532, 4
          %s534 = smul.addr %s533, 4
          %s535 = scalar_lea.vmem %s2, %s534
        $region44: #{tpu_custom_call.1} parent=31 // pred_fallthru
          _
        // Predicated region
        $region45: #{tpu_custom_call.1} parent=31 // pred_check
          %p536 = pneg %p147
        $region46: #{tpu_custom_call.1} parent=31 // pred_check_branch
          %538 = sbr.rel (%p536) target = $region48
        $region47: #{tpu_custom_call.1} parent=31 // pred_region
          %s539 = sand.u32 %s37, 1
          %s540 = scalar_lea.sflag [#allocation7], %s539
          %s541 = sand.u32 %s137, 1
          %s542 = scalar_lea.vmem [#allocation6], %s541
          %s544 = ssub.s32 16, 16
          %545 = vsyncadd %s540, %s544
          %s546 = smul.addr %s45, 16
          %s547 = scalar_lea.hbm %s3, %s546
          %s549 = sshll.u32 %s542, 4
          %s550 = int_to_ptr.vmem [resolvable:$true] %s549
          %552 = dma.hbm_to_vmem [thread:$0]  %s547, 16, %s550, %s540
        $region48: #{tpu_custom_call.1} parent=31 // pred_fallthru
          _
        // Predicated region
        $region49: #{tpu_custom_call.1} parent=31 // pred_check
          %p553 = pneg %p173
        $region50: #{tpu_custom_call.1} parent=31 // pred_check_branch
          %555 = sbr.rel (%p553) target = $region52
        $region51: #{tpu_custom_call.1} parent=31 // pred_region
          %p556 = scmp.lt.s32.totalorder %s45, 1
          %s557 = scalar_select %p556, %s45, 1
          %s558 = smul.addr %s557, 4
          %s559 = smul.addr %s558, 4
          %s560 = scalar_lea.vmem %s4, %s559
        $region52: #{tpu_custom_call.1} parent=31 // pred_fallthru
          _
        // Predicated region
        $region53: #{tpu_custom_call.1} parent=31 // pred_check
          %p561 = pneg %p199
        $region54: #{tpu_custom_call.1} parent=31 // pred_check_branch
          %563 = sbr.rel (%p561) target = $region56
        $region55: #{tpu_custom_call.1} parent=31 // pred_region
          %s564 = sand.u32 %s37, 1
          %s565 = scalar_lea.sflag [#allocation7], %s564
          %s566 = sand.u32 %s189, 1
          %s567 = scalar_lea.vmem [#allocation8], %s566
          %s569 = ssub.s32 16, 16
          %570 = vsyncadd %s565, %s569
          %s571 = smul.addr %s45, 16
          %s572 = scalar_lea.hbm %s5, %s571
          %s574 = sshll.u32 %s567, 4
          %s575 = int_to_ptr.vmem [resolvable:$true] %s574
          %577 = dma.hbm_to_vmem [thread:$0]  %s572, 16, %s575, %s565
        $region56: #{tpu_custom_call.1} parent=31 // pred_fallthru
          _
        // Predicated region
        $region57: #{tpu_custom_call.1} parent=31 // pred_check
          %p578 = pneg %p225
        $region58: #{tpu_custom_call.1} parent=31 // pred_check_branch
          %580 = sbr.rel (%p578) target = $region60
        $region59: #{tpu_custom_call.1} parent=31 // pred_region
          %p581 = scmp.lt.s32.totalorder %s45, 1
          %s582 = scalar_select %p581, %s45, 1
          %s583 = smul.addr %s582, 8
          %s584 = smul.addr %s583, 4
          %s585 = scalar_lea.vmem %s6, %s584
        $region60: #{tpu_custom_call.1} parent=31 // pred_fallthru
          _
        // Predicated region
        $region61: #{tpu_custom_call.1} parent=31 // pred_check
          %p586 = pneg %p251
        $region62: #{tpu_custom_call.1} parent=31 // pred_check_branch
          %588 = sbr.rel (%p586) target = $region64
        $region63: #{tpu_custom_call.1} parent=31 // pred_region
          %s589 = sand.u32 %s37, 1
          %s590 = scalar_lea.sflag [#allocation10], %s589
          %s591 = sand.u32 %s241, 1
          %s592 = scalar_lea.vmem [#allocation9], %s591
          %s594 = ssub.s32 16, 16
          %595 = vsyncadd %s590, %s594
          %s596 = smul.addr %s45, 16
          %s597 = scalar_lea.hbm %s7, %s596
          %s599 = sshll.u32 %s592, 4
          %s600 = int_to_ptr.vmem [resolvable:$true] %s599
          %602 = dma.hbm_to_vmem [thread:$0]  %s597, 16, %s600, %s590
        $region64: #{tpu_custom_call.1} parent=31 // pred_fallthru
          _
        // Predicated region
        $region65: #{tpu_custom_call.1} parent=31 // pred_check
          %p603 = pneg %p277
        $region66: #{tpu_custom_call.1} parent=31 // pred_check_branch
          %605 = sbr.rel (%p603) target = $region68
        $region67: #{tpu_custom_call.1} parent=31 // pred_region
          %s606 = sand.u32 %s37, 1
          %s607 = scalar_lea.sflag [#allocation10], %s606
          %s608 = sand.u32 %s267, 1
          %s609 = scalar_lea.vmem [#allocation11], %s608
          %s611 = ssub.s32 16, 16
          %612 = vsyncadd %s607, %s611
          %s613 = smul.addr %s45, 16
          %s614 = scalar_lea.hbm %s8, %s613
          %s616 = sshll.u32 %s609, 4
          %s617 = int_to_ptr.vmem [resolvable:$true] %s616
          %619 = dma.hbm_to_vmem [thread:$0]  %s614, 16, %s617, %s607
        $region68: #{tpu_custom_call.1} parent=31 // pred_fallthru
          _
        // Predicated region
        $region69: #{tpu_custom_call.1} parent=31 // pred_check
          %p620 = pneg %p303
        $region70: #{tpu_custom_call.1} parent=31 // pred_check_branch
          %622 = sbr.rel (%p620) target = $region72
        $region71: #{tpu_custom_call.1} parent=31 // pred_region
          %s623 = sand.u32 %s293, 1
          %s624 = scalar_lea.sflag [#allocation13], %s623
          %s625 = sand.u32 %s293, 1
          %s626 = scalar_lea.vmem [#allocation12], %s625
          %s628 = ssub.s32 16, 16
          %629 = vsyncadd %s624, %s628
          %s630 = smul.addr %s45, 16
          %s631 = scalar_lea.hbm %s9, %s630
          %s633 = sshll.u32 %s626, 4
          %s634 = int_to_ptr.vmem [resolvable:$true] %s633
          %636 = dma.hbm_to_vmem [thread:$0]  %s631, 16, %s634, %s624
        $region72: #{tpu_custom_call.1} parent=31 // pred_fallthru
          _
        // Predicated region
        $region73: #{tpu_custom_call.1} parent=31 // pred_check
          %p637 = pneg %p329
        $region74: #{tpu_custom_call.1} parent=31 // pred_check_branch
          %639 = sbr.rel (%p637) target = $region76
        $region75: #{tpu_custom_call.1} parent=31 // pred_region
          %p640 = scmp.lt.s32.totalorder %s45, 1
          %s641 = scalar_select %p640, %s45, 1
          %s642 = scalar_lea.vmem %s10, %s641
        $region76: #{tpu_custom_call.1} parent=31 // pred_fallthru
          _
        // Predicated region
        $region77: #{tpu_custom_call.1} parent=31 // pred_check
          %p643 = pneg %p355
        $region78: #{tpu_custom_call.1} parent=31 // pred_check_branch
          %645 = sbr.rel (%p643) target = $region80
        $region79: #{tpu_custom_call.1} parent=31 // pred_region
          %p646 = scmp.lt.s32.totalorder %s45, 1
          %s647 = scalar_select %p646, %s45, 1
          %s648 = scalar_lea.vmem %s11, %s647
        $region80: #{tpu_custom_call.1} parent=31 // pred_fallthru
          _
      $region32: #{tpu_custom_call.1} parent=5 // pred_fallthru
        _
      %p649 = scmp.le.s32.totalorder 1, %s37
      %p650 = scmp.lt.s32.totalorder %s37, 5
      %p651 = pnand %p649, %p650
      %p652 = pneg %p651
      // Predicated region
      $region81: #{tpu_custom_call.1} parent=5 // pred_check
        _
      $region82: #{tpu_custom_call.1} parent=5 // pred_check_branch
        %654 = sbr.rel (%p651) target = $region84
      $region83: #{tpu_custom_call.1} parent=5 // pred_region
        %s655 = ssub.s32 %s37, 1
        %s656 = sand.u32 %s62, 1
        %s657 = scalar_lea.sflag [#allocation4], %s656
        %s658 = sand.u32 %s62, 1
        %s659 = smul.addr %s658, 8
        %s660 = scalar_lea.vmem [#allocation3], %s659
        // Predicated region
        $region85: #{tpu_custom_call.1} parent=83 // pred_check
          %p661 = pneg %p75
        $region86: #{tpu_custom_call.1} parent=83 // pred_check_branch
          %663 = sbr.rel (%p661) target = $region88
        $region87: #{tpu_custom_call.1} parent=83 // pred_region
          %664 = dma.done %s657, 128
        $region88: #{tpu_custom_call.1} parent=83 // pred_fallthru
          _
        %s665 = sand.u32 %s42, 1
        %s666 = scalar_lea.sflag [#allocation7], %s665
        %s667 = sand.u32 %s140, 1
        %s668 = scalar_lea.vmem [#allocation6], %s667
        // Predicated region
        $region89: #{tpu_custom_call.1} parent=83 // pred_check
          %p669 = pneg %p153
        $region90: #{tpu_custom_call.1} parent=83 // pred_check_branch
          %671 = sbr.rel (%p669) target = $region92
        $region91: #{tpu_custom_call.1} parent=83 // pred_region
          %672 = dma.done %s666, 16
        $region92: #{tpu_custom_call.1} parent=83 // pred_fallthru
          _
        %s673 = sand.u32 %s42, 1
        %s674 = scalar_lea.sflag [#allocation7], %s673
        %s675 = sand.u32 %s192, 1
        %s676 = scalar_lea.vmem [#allocation8], %s675
        // Predicated region
        $region93: #{tpu_custom_call.1} parent=83 // pred_check
          %p677 = pneg %p205
        $region94: #{tpu_custom_call.1} parent=83 // pred_check_branch
          %679 = sbr.rel (%p677) target = $region96
        $region95: #{tpu_custom_call.1} parent=83 // pred_region
          %680 = dma.done %s674, 16
        $region96: #{tpu_custom_call.1} parent=83 // pred_fallthru
          _
        %s681 = sand.u32 %s42, 1
        %s682 = scalar_lea.sflag [#allocation10], %s681
        %s683 = sand.u32 %s244, 1
        %s684 = scalar_lea.vmem [#allocation9], %s683
        // Predicated region
        $region97: #{tpu_custom_call.1} parent=83 // pred_check
          %p685 = pneg %p257
        $region98: #{tpu_custom_call.1} parent=83 // pred_check_branch
          %687 = sbr.rel (%p685) target = $region100
        $region99: #{tpu_custom_call.1} parent=83 // pred_region
          %688 = dma.done %s682, 16
        $region100: #{tpu_custom_call.1} parent=83 // pred_fallthru
          _
        %s689 = sand.u32 %s42, 1
        %s690 = scalar_lea.sflag [#allocation10], %s689
        %s691 = sand.u32 %s270, 1
        %s692 = scalar_lea.vmem [#allocation11], %s691
        // Predicated region
        $region101: #{tpu_custom_call.1} parent=83 // pred_check
          %p693 = pneg %p283
        $region102: #{tpu_custom_call.1} parent=83 // pred_check_branch
          %695 = sbr.rel (%p693) target = $region104
        $region103: #{tpu_custom_call.1} parent=83 // pred_region
          %696 = dma.done %s690, 16
        $region104: #{tpu_custom_call.1} parent=83 // pred_fallthru
          _
        %s697 = sand.u32 %s296, 1
        %s698 = scalar_lea.sflag [#allocation13], %s697
        %s699 = sand.u32 %s296, 1
        %s700 = scalar_lea.vmem [#allocation12], %s699
        // Predicated region
        $region105: #{tpu_custom_call.1} parent=83 // pred_check
          %p701 = pneg %p309
        $region106: #{tpu_custom_call.1} parent=83 // pred_check_branch
          %703 = sbr.rel (%p701) target = $region108
        $region107: #{tpu_custom_call.1} parent=83 // pred_region
          %704 = dma.done %s698, 16
        $region108: #{tpu_custom_call.1} parent=83 // pred_fallthru
          _
        %s705 = sand.u32 %s62, 1
        %s706 = scalar_lea.sflag [#allocation4], %s705
        %s707 = sand.u32 %s62, 1
        %s708 = smul.addr %s707, 8
        %s709 = scalar_lea.vmem [#allocation3], %s708
        %p710 = pneg %p75
        %p711 = pneg %p72
        %p712 = scmp.lt.s32.totalorder %s47, 1
        %s713 = scalar_select %p712, %s47, 1
        %s714 = smul.addr %s713, 4
        %s715 = smul.addr %s714, 4
        %s716 = scalar_lea.vmem %s1, %s715
        %p717 = pneg %p101
        %p718 = pneg %p98
        %p719 = scmp.lt.s32.totalorder %s47, 1
        %s720 = scalar_select %p719, %s47, 1
        %s721 = smul.addr %s720, 4
        %s722 = smul.addr %s721, 4
        %s723 = scalar_lea.vmem %s2, %s722
        %p724 = pneg %p127
        %p725 = pneg %p124
        %s726 = sand.u32 %s42, 1
        %s727 = scalar_lea.sflag [#allocation7], %s726
        %s728 = sand.u32 %s140, 1
        %s729 = scalar_lea.vmem [#allocation6], %s728
        %p730 = pneg %p153
        %p731 = pneg %p150
        %p732 = scmp.lt.s32.totalorder %s47, 1
        %s733 = scalar_select %p732, %s47, 1
        %s734 = smul.addr %s733, 4
        %s735 = smul.addr %s734, 4
        %s736 = scalar_lea.vmem %s4, %s735
        %p737 = pneg %p179
        %p738 = pneg %p176
        %s739 = sand.u32 %s42, 1
        %s740 = scalar_lea.sflag [#allocation7], %s739
        %s741 = sand.u32 %s192, 1
        %s742 = scalar_lea.vmem [#allocation8], %s741
        %p743 = pneg %p205
        %p744 = pneg %p202
        %p745 = scmp.lt.s32.totalorder %s47, 1
        %s746 = scalar_select %p745, %s47, 1
        %s747 = smul.addr %s746, 8
        %s748 = smul.addr %s747, 4
        %s749 = scalar_lea.vmem %s6, %s748
        %p750 = pneg %p231
        %p751 = pneg %p228
        %s752 = sand.u32 %s42, 1
        %s753 = scalar_lea.sflag [#allocation10], %s752
        %s754 = sand.u32 %s244, 1
        %s755 = scalar_lea.vmem [#allocation9], %s754
        %p756 = pneg %p257
        %p757 = pneg %p254
        %s758 = sand.u32 %s42, 1
        %s759 = scalar_lea.sflag [#allocation10], %s758
        %s760 = sand.u32 %s270, 1
        %s761 = scalar_lea.vmem [#allocation11], %s760
        %p762 = pneg %p283
        %p763 = pneg %p280
        %s764 = sand.u32 %s296, 1
        %s765 = scalar_lea.sflag [#allocation13], %s764
        %s766 = sand.u32 %s296, 1
        %s767 = scalar_lea.vmem [#allocation12], %s766
        %p768 = pneg %p309
        %p769 = pneg %p306
        %p770 = scmp.lt.s32.totalorder %s47, 1
        %s771 = scalar_select %p770, %s47, 1
        %s772 = scalar_lea.vmem %s10, %s771
        %p773 = pneg %p335
        %p774 = pneg %p332
        %p775 = scmp.lt.s32.totalorder %s47, 1
        %s776 = scalar_select %p775, %s47, 1
        %s777 = scalar_lea.vmem %s11, %s776
        %p778 = pneg %p361
        %p779 = pneg %p358
        %p780 = pneg %p382
        %p781 = pneg %p379
        %p782 = pneg %p403
        %p783 = pneg %p400
        %p784 = pneg %p424
        %p785 = pneg %p421
        %p786 = pneg %p445
        %p787 = pneg %p442
        %p788 = pneg %p471
        %p789 = pneg %p468
        %s790 = sand.u32 %s458, 1
        %s791 = scalar_lea.sflag [#allocation5], %s790
        %s792 = sand.u32 %s458, 1
        %s793 = smul.addr %s792, 8
        %s794 = scalar_lea.vmem [#allocation14], %s793
        %p795 = scmp.lt.s32.totalorder %s47, 1
        %s796 = scalar_select %p795, %s47, 1
        %s797 = smul.addr %s796, 4
        %s798 = smul.addr %s797, 4
        %s799 = scalar_lea.vmem %s1, %s798
        %p800 = scmp.lt.s32.totalorder %s47, 1
        %s801 = scalar_select %p800, %s47, 1
        %s802 = smul.addr %s801, 4
        %s803 = smul.addr %s802, 4
        %s804 = scalar_lea.vmem %s2, %s803
        %p805 = scmp.lt.s32.totalorder %s47, 1
        %s806 = scalar_select %p805, %s47, 1
        %s807 = smul.addr %s806, 4
        %s808 = smul.addr %s807, 4
        %s809 = scalar_lea.vmem %s4, %s808
        %p810 = scmp.lt.s32.totalorder %s47, 1
        %s811 = scalar_select %p810, %s47, 1
        %s812 = smul.addr %s811, 8
        %s813 = smul.addr %s812, 4
        %s814 = scalar_lea.vmem %s6, %s813
        %p815 = scmp.lt.s32.totalorder %s47, 1
        %s816 = scalar_select %p815, %s47, 1
        %s817 = scalar_lea.vmem %s10, %s816
        %p818 = scmp.lt.s32.totalorder %s47, 1
        %s819 = scalar_select %p818, %s47, 1
        %s820 = scalar_lea.vmem %s11, %s819
        %p822 = scmp.eq.s32.totalorder %s47, 0
        // Predicated region
        $region109: #{tpu_custom_call.1} parent=83 // pred_check
          %p823 = pneg %p822
        $region110: #{tpu_custom_call.1} parent=83 // pred_check_branch
          %825 = sbr.rel (%p823) target = $region112
        $region111: #{tpu_custom_call.1} parent=83 // pred_region
          %v826 = vld [vmem:[%s660] sm:$0xff]
          %vm827 = vcmask 261120
          %828 = vst.msk [vmem:[#allocation2] sm:$0xff] %vm827, %v826
        $region112: #{tpu_custom_call.1} parent=83 // pred_fallthru
          _
        %v829 = vld [vmem:[#allocation2] sm:$0xff]
        %v830 = vpack.c.bf16 %v829, %v829
        %v831 = vld [vmem:[%s799] sm:$0xf]
        %v832 = vld [vmem:[%s799 + $0x4] sm:$0xf]
        %v833 = vld [vmem:[%s799 + $0x8] sm:$0xf]
        %v834 = vld [vmem:[%s799 + $0xc] sm:$0xf]
        %v839 = vunpack.c.l.b16 %v831
        %v840 = vunpack.c.l.b16 %v832
        %v841 = vunpack.c.l.b16 %v833
        %v842 = vunpack.c.l.b16 %v834
        %v843 = vpack.c.b16 %v840, %v839
        %v844 = vpack.c.b16 %v842, %v841
        %vm847 = vcmask 261120
        %v849 = vsel %vm847, %v830, 0
        %851 = vmatprep.subr.bf16.mxu0 0
        %852 = vmatpush1.bf16.msra.mxu0 0
        %853 = vmatprep.subr.bf16.mxu0 0
        %854 = vmatpush1.bf16.msra.mxu0 0
        %855 = vmatprep.subr.bf16.mxu0 0
        %856 = vmatpush1.bf16.msra.mxu0 0
        %857 = vmatprep.subr.bf16.mxu0 0
        %858 = vmatpush1.bf16.msra.mxu0 0
        %859 = vmatprep.subr.bf16.mxu0 0
        %860 = vmatpush1.bf16.msra.mxu0 0
        %861 = vmatprep.subr.bf16.mxu0 0
        %862 = vmatpush1.bf16.msra.mxu0 0
        %863 = vmatprep.subr.bf16.mxu0 0
        %864 = vmatpush1.bf16.msra.mxu0 %v844
        %865 = vmatprep.subr.bf16.mxu0 0
        %866 = vmatpush1.bf16.msra.mxu0 %v843
        %867 = vmatprep.subr.bf16.mxu0 0
        %868 = vmatpush2.bf16.msra.mxu0 0
        %869 = vmatprep.subr.bf16.mxu0 0
        %870 = vmatpush2.bf16.msra.mxu0 0
        %871 = vmatprep.subr.bf16.mxu0 0
        %872 = vmatpush2.bf16.msra.mxu0 0
        %873 = vmatprep.subr.bf16.mxu0 0
        %874 = vmatpush2.bf16.msra.mxu0 0
        %875 = vmatprep.subr.bf16.mxu0 0
        %876 = vmatpush2.bf16.msra.mxu0 0
        %877 = vmatprep.subr.bf16.mxu0 0
        %878 = vmatpush2.bf16.msra.mxu0 0
        %879 = vmatprep.subr.bf16.mxu0 0
        %880 = vmatpush2.bf16.msra.mxu0 0
        %881 = vmatprep.subr.bf16.mxu0 0
        %882 = vmatpush2.bf16.msra.mxu0 0
        %883 = vmatprep.mubr.bf16.mxu0 0
        %884 = vmatmul.mubr.bf16.gmra.mxu0 %v849
        %v885 = vpop.f32.mrf.mxu0
        %v886 = vadd.f32 0.0, %v885
        %v887 = vpop.f32.mrf.mxu0
        %v888 = vpop.f32.mrf.mxu0
        %v889 = vpop.f32.mrf.mxu0
        %890 = vdwg.mxu0
        %v891 = vpack.c.bf16 %v886, %v886
        %893 = vrot.lane.b32.xlu0 %v891, 96
        %v894 = vpop.permute.xlu0 %893
        %vm895 = vcmask 64512
        %v897 = vsel %vm895, %v891, 0
        %v900 = vsel %vm895, %v894, 0
        %902 = vmatprep.subr.bf16.mxu0 0
        %903 = vmatpush1.bf16.xpose.msra.mxu0 0
        %904 = vmatprep.subr.bf16.mxu0 0
        %905 = vmatpush1.bf16.xpose.msra.mxu0 0
        %906 = vmatprep.subr.bf16.mxu0 0
        %907 = vmatpush1.bf16.xpose.msra.mxu0 0
        %908 = vmatprep.subr.bf16.mxu0 0
        %909 = vmatpush1.bf16.xpose.msra.mxu0 0
        %910 = vmatprep.subr.bf16.mxu0 0
        %911 = vmatpush1.bf16.xpose.msra.mxu0 0
        %912 = vmatprep.subr.bf16.mxu0 0
        %913 = vmatpush1.bf16.xpose.msra.mxu0 0
        %914 = vmatprep.subr.bf16.mxu0 0
        %915 = vmatpush1.bf16.xpose.msra.mxu0 0
        %916 = vmatprep.subr.bf16.mxu0 0
        %917 = vmatpush1.bf16.xpose.msra.mxu0 %v900
        %918 = vmatprep.subr.bf16.mxu0 0
        %919 = vmatpush2.bf16.xpose.msra.mxu0 0
        %920 = vmatprep.subr.bf16.mxu0 0
        %921 = vmatpush2.bf16.xpose.msra.mxu0 0
        %922 = vmatprep.subr.bf16.mxu0 0
        %923 = vmatpush2.bf16.xpose.msra.mxu0 0
        %924 = vmatprep.subr.bf16.mxu0 0
        %925 = vmatpush2.bf16.xpose.msra.mxu0 0
        %926 = vmatprep.subr.bf16.mxu0 0
        %927 = vmatpush2.bf16.xpose.msra.mxu0 0
        %928 = vmatprep.subr.bf16.mxu0 0
        %929 = vmatpush2.bf16.xpose.msra.mxu0 0
        %930 = vmatprep.subr.bf16.mxu0 0
        %931 = vmatpush2.bf16.xpose.msra.mxu0 0
        %932 = vmatprep.subr.bf16.mxu0 0
        %933 = vmatpush2.bf16.xpose.msra.mxu0 0
        %934 = vmatprep.mubr.bf16.mxu0 0
        %935 = vmatmul.mubr.bf16.gmra.mxu0 %v897
        %v936 = vpop.f32.mrf.mxu0
        %v937 = vadd.f32 0.0, %v936
        %v938 = vpop.f32.mrf.mxu0
        %v939 = vpop.f32.mrf.mxu0
        %v940 = vpop.f32.mrf.mxu0
        %941 = vdwg.mxu0
        %v942 = vsel %vm895, %v937, -inf
        %943 = vmax.xlane.f32.xlu0 %v942
        %v944 = vpop.xlane.xlu0 %943
        %v945 = vsub.f32 %v937, %v944
        %v946 = vmul.f32 %v945, 1.442695
        %v947 = vpow.pop %v946
        %v948 = vsel %vm895, %v947, 0.0
        %949 = vadd.xlane.f32.xlu0 %v948
        %v950 = vpop.xlane.xlu0 %949
        %v951 = vrcp.pop %v950
        %v952 = vmul.f32 %v947, %v951
        %v953 = vpack.c.bf16 %v952, %v952
        %954 = vrot.lane.b32.xlu0 %v891, 64
        %v955 = vpop.permute.xlu0 %954
        %v957 = vsel %vm895, %v953, 0
        %vm959 = vcmask 1043456
        %v961 = vsel %vm959, %v955, 0
        %963 = vmatprep.subr.bf16.mxu0 0
        %964 = vmatpush1.bf16.msra.mxu0 0
        %965 = vmatprep.subr.bf16.mxu0 0
        %966 = vmatpush1.bf16.msra.mxu0 0
        %967 = vmatprep.subr.bf16.mxu0 0
        %968 = vmatpush1.bf16.msra.mxu0 0
        %969 = vmatprep.subr.bf16.mxu0 0
        %970 = vmatpush1.bf16.msra.mxu0 0
        %971 = vmatprep.subr.bf16.mxu0 0
        %972 = vmatpush1.bf16.msra.mxu0 0
        %973 = vmatprep.subr.bf16.mxu0 0
        %974 = vmatpush1.bf16.msra.mxu0 0
        %975 = vmatprep.subr.bf16.mxu0 0
        %976 = vmatpush1.bf16.msra.mxu0 0
        %977 = vmatprep.subr.bf16.mxu0 0
        %978 = vmatpush1.bf16.msra.mxu0 %v961
        %979 = vmatprep.subr.bf16.mxu0 0
        %980 = vmatpush2.bf16.msra.mxu0 0
        %981 = vmatprep.subr.bf16.mxu0 0
        %982 = vmatpush2.bf16.msra.mxu0 0
        %983 = vmatprep.subr.bf16.mxu0 0
        %984 = vmatpush2.bf16.msra.mxu0 0
        %985 = vmatprep.subr.bf16.mxu0 0
        %986 = vmatpush2.bf16.msra.mxu0 0
        %987 = vmatprep.subr.bf16.mxu0 0
        %988 = vmatpush2.bf16.msra.mxu0 0
        %989 = vmatprep.subr.bf16.mxu0 0
        %990 = vmatpush2.bf16.msra.mxu0 0
        %991 = vmatprep.subr.bf16.mxu0 0
        %992 = vmatpush2.bf16.msra.mxu0 0
        %993 = vmatprep.subr.bf16.mxu0 0
        %994 = vmatpush2.bf16.msra.mxu0 0
        %995 = vmatprep.mubr.bf16.mxu0 0
        %996 = vmatmul.mubr.bf16.gmra.mxu0 %v957
        %v997 = vpop.f32.mrf.mxu0
        %v998 = vadd.f32 0.0, %v997
        %v999 = vpop.f32.mrf.mxu0
        %v1000 = vpop.f32.mrf.mxu0
        %v1001 = vpop.f32.mrf.mxu0
        %1002 = vdwg.mxu0
        %1003 = vrot.lane.b32.xlu0 %v891, 120
        %v1004 = vpop.permute.xlu0 %1003
        %1005 = vrot.lane.b32.xlu0 %v891, 88
        %v1006 = vpop.permute.xlu0 %1005
        %v1008 = vsel %vm895, %v1004, 0
        %v1011 = vsel %vm895, %v1006, 0
        %1013 = vmatprep.subr.bf16.mxu0 0
        %1014 = vmatpush1.bf16.xpose.msra.mxu0 0
        %1015 = vmatprep.subr.bf16.mxu0 0
        %1016 = vmatpush1.bf16.xpose.msra.mxu0 0
        %1017 = vmatprep.subr.bf16.mxu0 0
        %1018 = vmatpush1.bf16.xpose.msra.mxu0 0
        %1019 = vmatprep.subr.bf16.mxu0 0
        %1020 = vmatpush1.bf16.xpose.msra.mxu0 0
        %1021 = vmatprep.subr.bf16.mxu0 0
        %1022 = vmatpush1.bf16.xpose.msra.mxu0 0
        %1023 = vmatprep.subr.bf16.mxu0 0
        %1024 = vmatpush1.bf16.xpose.msra.mxu0 0
        %1025 = vmatprep.subr.bf16.mxu0 0
        %1026 = vmatpush1.bf16.xpose.msra.mxu0 0
        %1027 = vmatprep.subr.bf16.mxu0 0
        %1028 = vmatpush1.bf16.xpose.msra.mxu0 %v1011
        %1029 = vmatprep.subr.bf16.mxu0 0
        %1030 = vmatpush2.bf16.xpose.msra.mxu0 0
        %1031 = vmatprep.subr.bf16.mxu0 0
        %1032 = vmatpush2.bf16.xpose.msra.mxu0 0
        %1033 = vmatprep.subr.bf16.mxu0 0
        %1034 = vmatpush2.bf16.xpose.msra.mxu0 0
        %1035 = vmatprep.subr.bf16.mxu0 0
        %1036 = vmatpush2.bf16.xpose.msra.mxu0 0
        %1037 = vmatprep.subr.bf16.mxu0 0
        %1038 = vmatpush2.bf16.xpose.msra.mxu0 0
        %1039 = vmatprep.subr.bf16.mxu0 0
        %1040 = vmatpush2.bf16.xpose.msra.mxu0 0
        %1041 = vmatprep.subr.bf16.mxu0 0
        %1042 = vmatpush2.bf16.xpose.msra.mxu0 0
        %1043 = vmatprep.subr.bf16.mxu0 0
        %1044 = vmatpush2.bf16.xpose.msra.mxu0 0
        %1045 = vmatprep.mubr.bf16.mxu0 0
        %1046 = vmatmul.mubr.bf16.gmra.mxu0 %v1008
        %v1047 = vpop.f32.mrf.mxu0
        %v1048 = vadd.f32 0.0, %v1047
        %v1049 = vpop.f32.mrf.mxu0
        %v1050 = vpop.f32.mrf.mxu0
        %v1051 = vpop.f32.mrf.mxu0
        %1052 = vdwg.mxu0
        %v1053 = vsel %vm895, %v1048, -inf
        %1054 = vmax.xlane.f32.xlu0 %v1053
        %v1055 = vpop.xlane.xlu0 %1054
        %v1056 = vsub.f32 %v1048, %v1055
        %v1057 = vmul.f32 %v1056, 1.442695
        %v1058 = vpow.pop %v1057
        %v1059 = vsel %vm895, %v1058, 0.0
        %1060 = vadd.xlane.f32.xlu0 %v1059
        %v1061 = vpop.xlane.xlu0 %1060
        %v1062 = vrcp.pop %v1061
        %v1063 = vmul.f32 %v1058, %v1062
        %v1064 = vpack.c.bf16 %v1063, %v1063
        %1065 = vrot.lane.b32.xlu0 %v891, 56
        %v1066 = vpop.permute.xlu0 %1065
        %v1068 = vsel %vm895, %v1064, 0
        %v1071 = vsel %vm959, %v1066, 0
        %1073 = vmatprep.subr.bf16.mxu0 0
        %1074 = vmatpush1.bf16.msra.mxu0 0
        %1075 = vmatprep.subr.bf16.mxu0 0
        %1076 = vmatpush1.bf16.msra.mxu0 0
        %1077 = vmatprep.subr.bf16.mxu0 0
        %1078 = vmatpush1.bf16.msra.mxu0 0
        %1079 = vmatprep.subr.bf16.mxu0 0
        %1080 = vmatpush1.bf16.msra.mxu0 0
        %1081 = vmatprep.subr.bf16.mxu0 0
        %1082 = vmatpush1.bf16.msra.mxu0 0
        %1083 = vmatprep.subr.bf16.mxu0 0
        %1084 = vmatpush1.bf16.msra.mxu0 0
        %1085 = vmatprep.subr.bf16.mxu0 0
        %1086 = vmatpush1.bf16.msra.mxu0 0
        %1087 = vmatprep.subr.bf16.mxu0 0
        %1088 = vmatpush1.bf16.msra.mxu0 %v1071
        %1089 = vmatprep.subr.bf16.mxu0 0
        %1090 = vmatpush2.bf16.msra.mxu0 0
        %1091 = vmatprep.subr.bf16.mxu0 0
        %1092 = vmatpush2.bf16.msra.mxu0 0
        %1093 = vmatprep.subr.bf16.mxu0 0
        %1094 = vmatpush2.bf16.msra.mxu0 0
        %1095 = vmatprep.subr.bf16.mxu0 0
        %1096 = vmatpush2.bf16.msra.mxu0 0
        %1097 = vmatprep.subr.bf16.mxu0 0
        %1098 = vmatpush2.bf16.msra.mxu0 0
        %1099 = vmatprep.subr.bf16.mxu0 0
        %1100 = vmatpush2.bf16.msra.mxu0 0
        %1101 = vmatprep.subr.bf16.mxu0 0
        %1102 = vmatpush2.bf16.msra.mxu0 0
        %1103 = vmatprep.subr.bf16.mxu0 0
        %1104 = vmatpush2.bf16.msra.mxu0 0
        %1105 = vmatprep.mubr.bf16.mxu0 0
        %1106 = vmatmul.mubr.bf16.gmra.mxu0 %v1068
        %v1107 = vpop.f32.mrf.mxu0
        %v1108 = vadd.f32 0.0, %v1107
        %v1109 = vpop.f32.mrf.mxu0
        %v1110 = vpop.f32.mrf.mxu0
        %v1111 = vpop.f32.mrf.mxu0
        %1112 = vdwg.mxu0
        %1113 = vrot.lane.b32.xlu0 %v891, 112
        %v1114 = vpop.permute.xlu0 %1113
        %1115 = vrot.lane.b32.xlu0 %v891, 80
        %v1116 = vpop.permute.xlu0 %1115
        %v1118 = vsel %vm895, %v1114, 0
        %v1121 = vsel %vm895, %v1116, 0
        %1123 = vmatprep.subr.bf16.mxu0 0
        %1124 = vmatpush1.bf16.xpose.msra.mxu0 0
        %1125 = vmatprep.subr.bf16.mxu0 0
        %1126 = vmatpush1.bf16.xpose.msra.mxu0 0
        %1127 = vmatprep.subr.bf16.mxu0 0
        %1128 = vmatpush1.bf16.xpose.msra.mxu0 0
        %1129 = vmatprep.subr.bf16.mxu0 0
        %1130 = vmatpush1.bf16.xpose.msra.mxu0 0
        %1131 = vmatprep.subr.bf16.mxu0 0
        %1132 = vmatpush1.bf16.xpose.msra.mxu0 0
        %1133 = vmatprep.subr.bf16.mxu0 0
        %1134 = vmatpush1.bf16.xpose.msra.mxu0 0
        %1135 = vmatprep.subr.bf16.mxu0 0
        %1136 = vmatpush1.bf16.xpose.msra.mxu0 0
        %1137 = vmatprep.subr.bf16.mxu0 0
        %1138 = vmatpush1.bf16.xpose.msra.mxu0 %v1121
        %1139 = vmatprep.subr.bf16.mxu0 0
        %1140 = vmatpush2.bf16.xpose.msra.mxu0 0
        %1141 = vmatprep.subr.bf16.mxu0 0
        %1142 = vmatpush2.bf16.xpose.msra.mxu0 0
        %1143 = vmatprep.subr.bf16.mxu0 0
        %1144 = vmatpush2.bf16.xpose.msra.mxu0 0
        %1145 = vmatprep.subr.bf16.mxu0 0
        %1146 = vmatpush2.bf16.xpose.msra.mxu0 0
        %1147 = vmatprep.subr.bf16.mxu0 0
        %1148 = vmatpush2.bf16.xpose.msra.mxu0 0
        %1149 = vmatprep.subr.bf16.mxu0 0
        %1150 = vmatpush2.bf16.xpose.msra.mxu0 0
        %1151 = vmatprep.subr.bf16.mxu0 0
        %1152 = vmatpush2.bf16.xpose.msra.mxu0 0
        %1153 = vmatprep.subr.bf16.mxu0 0
        %1154 = vmatpush2.bf16.xpose.msra.mxu0 0
        %1155 = vmatprep.mubr.bf16.mxu0 0
        %1156 = vmatmul.mubr.bf16.gmra.mxu0 %v1118
        %v1157 = vpop.f32.mrf.mxu0
        %v1158 = vadd.f32 0.0, %v1157
        %v1159 = vpop.f32.mrf.mxu0
        %v1160 = vpop.f32.mrf.mxu0
        %v1161 = vpop.f32.mrf.mxu0
        %1162 = vdwg.mxu0
        %v1163 = vsel %vm895, %v1158, -inf
        %1164 = vmax.xlane.f32.xlu0 %v1163
        %v1165 = vpop.xlane.xlu0 %1164
        %v1166 = vsub.f32 %v1158, %v1165
        %v1167 = vmul.f32 %v1166, 1.442695
        %v1168 = vpow.pop %v1167
        %v1169 = vsel %vm895, %v1168, 0.0
        %1170 = vadd.xlane.f32.xlu0 %v1169
        %v1171 = vpop.xlane.xlu0 %1170
        %v1172 = vrcp.pop %v1171
        %v1173 = vmul.f32 %v1168, %v1172
        %v1174 = vpack.c.bf16 %v1173, %v1173
        %1175 = vrot.lane.b32.xlu0 %v891, 48
        %v1176 = vpop.permute.xlu0 %1175
        %v1178 = vsel %vm895, %v1174, 0
        %v1181 = vsel %vm959, %v1176, 0
        %1183 = vmatprep.subr.bf16.mxu0 0
        %1184 = vmatpush1.bf16.msra.mxu0 0
        %1185 = vmatprep.subr.bf16.mxu0 0
        %1186 = vmatpush1.bf16.msra.mxu0 0
        %1187 = vmatprep.subr.bf16.mxu0 0
        %1188 = vmatpush1.bf16.msra.mxu0 0
        %1189 = vmatprep.subr.bf16.mxu0 0
        %1190 = vmatpush1.bf16.msra.mxu0 0
        %1191 = vmatprep.subr.bf16.mxu0 0
        %1192 = vmatpush1.bf16.msra.mxu0 0
        %1193 = vmatprep.subr.bf16.mxu0 0
        %1194 = vmatpush1.bf16.msra.mxu0 0
        %1195 = vmatprep.subr.bf16.mxu0 0
        %1196 = vmatpush1.bf16.msra.mxu0 0
        %1197 = vmatprep.subr.bf16.mxu0 0
        %1198 = vmatpush1.bf16.msra.mxu0 %v1181
        %1199 = vmatprep.subr.bf16.mxu0 0
        %1200 = vmatpush2.bf16.msra.mxu0 0
        %1201 = vmatprep.subr.bf16.mxu0 0
        %1202 = vmatpush2.bf16.msra.mxu0 0
        %1203 = vmatprep.subr.bf16.mxu0 0
        %1204 = vmatpush2.bf16.msra.mxu0 0
        %1205 = vmatprep.subr.bf16.mxu0 0
        %1206 = vmatpush2.bf16.msra.mxu0 0
        %1207 = vmatprep.subr.bf16.mxu0 0
        %1208 = vmatpush2.bf16.msra.mxu0 0
        %1209 = vmatprep.subr.bf16.mxu0 0
        %1210 = vmatpush2.bf16.msra.mxu0 0
        %1211 = vmatprep.subr.bf16.mxu0 0
        %1212 = vmatpush2.bf16.msra.mxu0 0
        %1213 = vmatprep.subr.bf16.mxu0 0
        %1214 = vmatpush2.bf16.msra.mxu0 0
        %1215 = vmatprep.mubr.bf16.mxu0 0
        %1216 = vmatmul.mubr.bf16.gmra.mxu0 %v1178
        %v1217 = vpop.f32.mrf.mxu0
        %v1218 = vadd.f32 0.0, %v1217
        %v1219 = vpop.f32.mrf.mxu0
        %v1220 = vpop.f32.mrf.mxu0
        %v1221 = vpop.f32.mrf.mxu0
        %1222 = vdwg.mxu0
        %1223 = vrot.lane.b32.xlu0 %v891, 104
        %v1224 = vpop.permute.xlu0 %1223
        %1225 = vrot.lane.b32.xlu0 %v891, 72
        %v1226 = vpop.permute.xlu0 %1225
        %v1228 = vsel %vm895, %v1224, 0
        %v1231 = vsel %vm895, %v1226, 0
        %1233 = vmatprep.subr.bf16.mxu0 0
        %1234 = vmatpush1.bf16.xpose.msra.mxu0 0
        %1235 = vmatprep.subr.bf16.mxu0 0
        %1236 = vmatpush1.bf16.xpose.msra.mxu0 0
        %1237 = vmatprep.subr.bf16.mxu0 0
        %1238 = vmatpush1.bf16.xpose.msra.mxu0 0
        %1239 = vmatprep.subr.bf16.mxu0 0
        %1240 = vmatpush1.bf16.xpose.msra.mxu0 0
        %1241 = vmatprep.subr.bf16.mxu0 0
        %1242 = vmatpush1.bf16.xpose.msra.mxu0 0
        %1243 = vmatprep.subr.bf16.mxu0 0
        %1244 = vmatpush1.bf16.xpose.msra.mxu0 0
        %1245 = vmatprep.subr.bf16.mxu0 0
        %1246 = vmatpush1.bf16.xpose.msra.mxu0 0
        %1247 = vmatprep.subr.bf16.mxu0 0
        %1248 = vmatpush1.bf16.xpose.msra.mxu0 %v1231
        %1249 = vmatprep.subr.bf16.mxu0 0
        %1250 = vmatpush2.bf16.xpose.msra.mxu0 0
        %1251 = vmatprep.subr.bf16.mxu0 0
        %1252 = vmatpush2.bf16.xpose.msra.mxu0 0
        %1253 = vmatprep.subr.bf16.mxu0 0
        %1254 = vmatpush2.bf16.xpose.msra.mxu0 0
        %1255 = vmatprep.subr.bf16.mxu0 0
        %1256 = vmatpush2.bf16.xpose.msra.mxu0 0
        %1257 = vmatprep.subr.bf16.mxu0 0
        %1258 = vmatpush2.bf16.xpose.msra.mxu0 0
        %1259 = vmatprep.subr.bf16.mxu0 0
        %1260 = vmatpush2.bf16.xpose.msra.mxu0 0
        %1261 = vmatprep.subr.bf16.mxu0 0
        %1262 = vmatpush2.bf16.xpose.msra.mxu0 0
        %1263 = vmatprep.subr.bf16.mxu0 0
        %1264 = vmatpush2.bf16.xpose.msra.mxu0 0
        %1265 = vmatprep.mubr.bf16.mxu0 0
        %1266 = vmatmul.mubr.bf16.gmra.mxu0 %v1228
        %v1267 = vpop.f32.mrf.mxu0
        %v1268 = vadd.f32 0.0, %v1267
        %v1269 = vpop.f32.mrf.mxu0
        %v1270 = vpop.f32.mrf.mxu0
        %v1271 = vpop.f32.mrf.mxu0
        %1272 = vdwg.mxu0
        %v1273 = vsel %vm895, %v1268, -inf
        %1274 = vmax.xlane.f32.xlu0 %v1273
        %v1275 = vpop.xlane.xlu0 %1274
        %v1276 = vsub.f32 %v1268, %v1275
        %v1277 = vmul.f32 %v1276, 1.442695
        %v1278 = vpow.pop %v1277
        %v1279 = vsel %vm895, %v1278, 0.0
        %1280 = vadd.xlane.f32.xlu0 %v1279
        %v1281 = vpop.xlane.xlu0 %1280
        %v1282 = vrcp.pop %v1281
        %v1283 = vmul.f32 %v1278, %v1282
        %v1284 = vpack.c.bf16 %v1283, %v1283
        %1285 = vrot.lane.b32.xlu0 %v891, 40
        %v1286 = vpop.permute.xlu0 %1285
        %v1288 = vsel %vm895, %v1284, 0
        %v1291 = vsel %vm959, %v1286, 0
        %1293 = vmatprep.subr.bf16.mxu0 0
        %1294 = vmatpush1.bf16.msra.mxu0 0
        %1295 = vmatprep.subr.bf16.mxu0 0
        %1296 = vmatpush1.bf16.msra.mxu0 0
        %1297 = vmatprep.subr.bf16.mxu0 0
        %1298 = vmatpush1.bf16.msra.mxu0 0
        %1299 = vmatprep.subr.bf16.mxu0 0
        %1300 = vmatpush1.bf16.msra.mxu0 0
        %1301 = vmatprep.subr.bf16.mxu0 0
        %1302 = vmatpush1.bf16.msra.mxu0 0
        %1303 = vmatprep.subr.bf16.mxu0 0
        %1304 = vmatpush1.bf16.msra.mxu0 0
        %1305 = vmatprep.subr.bf16.mxu0 0
        %1306 = vmatpush1.bf16.msra.mxu0 0
        %1307 = vmatprep.subr.bf16.mxu0 0
        %1308 = vmatpush1.bf16.msra.mxu0 %v1291
        %1309 = vmatprep.subr.bf16.mxu0 0
        %1310 = vmatpush2.bf16.msra.mxu0 0
        %1311 = vmatprep.subr.bf16.mxu0 0
        %1312 = vmatpush2.bf16.msra.mxu0 0
        %1313 = vmatprep.subr.bf16.mxu0 0
        %1314 = vmatpush2.bf16.msra.mxu0 0
        %1315 = vmatprep.subr.bf16.mxu0 0
        %1316 = vmatpush2.bf16.msra.mxu0 0
        %1317 = vmatprep.subr.bf16.mxu0 0
        %1318 = vmatpush2.bf16.msra.mxu0 0
        %1319 = vmatprep.subr.bf16.mxu0 0
        %1320 = vmatpush2.bf16.msra.mxu0 0
        %1321 = vmatprep.subr.bf16.mxu0 0
        %1322 = vmatpush2.bf16.msra.mxu0 0
        %1323 = vmatprep.subr.bf16.mxu0 0
        %1324 = vmatpush2.bf16.msra.mxu0 0
        %1325 = vmatprep.mubr.bf16.mxu0 0
        %1326 = vmatmul.mubr.bf16.gmra.mxu0 %v1288
        %v1327 = vpop.f32.mrf.mxu0
        %v1328 = vadd.f32 0.0, %v1327
        %v1329 = vpop.f32.mrf.mxu0
        %v1330 = vpop.f32.mrf.mxu0
        %v1331 = vpop.f32.mrf.mxu0
        %1332 = vdwg.mxu0
        %1334 = vrot.lane.b32.xlu0 %v1108, 8
        %v1335 = vpop.permute.xlu0 %1334
        %1338 = vrot.lane.b32.xlu0 %v1218, 16
        %v1339 = vpop.permute.xlu0 %1338
        %1342 = vrot.lane.b32.xlu0 %v1328, 24
        %v1343 = vpop.permute.xlu0 %1342
        %v1345 = vsel %vm895, %v998, %v1335
        %vm1346 = vcmask 130048
        %v1347 = vsel %vm1346, %v1345, %v1339
        %vm1348 = vcmask 195584
        %v1349 = vsel %vm1348, %v1347, %v1343
        %v1350 = vpack.c.bf16 %v1349, %v1349
        %v1351 = vld [vmem:[%s804] sm:$0xf]
        %v1352 = vld [vmem:[%s804 + $0x4] sm:$0xf]
        %v1353 = vld [vmem:[%s804 + $0x8] sm:$0xf]
        %v1354 = vld [vmem:[%s804 + $0xc] sm:$0xf]
        %v1355 = vld [vmem:[%s668] sm:$0x1]
        %v1357 = vlaneseq
        %v1358 = vshrl.u32 %v1357, 7
        %v1359 = vsub.s32 0, %v1358
        %v1360 = vrot.slane %v1355, %v1359
        %v1366 = vunpack.c.l.b16 %v1351
        %v1367 = vunpack.c.l.b16 %v1352
        %v1368 = vunpack.c.l.b16 %v1353
        %v1369 = vunpack.c.l.b16 %v1354
        %v1370 = vpack.c.b16 %v1367, %v1366
        %v1371 = vpack.c.b16 %v1369, %v1368
        %v1375 = vsel %vm847, %v1350, 0
        %1377 = vmatprep.subr.bf16.mxu0 0
        %1378 = vmatpush1.bf16.msra.mxu0 0
        %1379 = vmatprep.subr.bf16.mxu0 0
        %1380 = vmatpush1.bf16.msra.mxu0 0
        %1381 = vmatprep.subr.bf16.mxu0 0
        %1382 = vmatpush1.bf16.msra.mxu0 0
        %1383 = vmatprep.subr.bf16.mxu0 0
        %1384 = vmatpush1.bf16.msra.mxu0 0
        %1385 = vmatprep.subr.bf16.mxu0 0
        %1386 = vmatpush1.bf16.msra.mxu0 0
        %1387 = vmatprep.subr.bf16.mxu0 0
        %1388 = vmatpush1.bf16.msra.mxu0 0
        %1389 = vmatprep.subr.bf16.mxu0 0
        %1390 = vmatpush1.bf16.msra.mxu0 %v1371
        %1391 = vmatprep.subr.bf16.mxu0 0
        %1392 = vmatpush1.bf16.msra.mxu0 %v1370
        %1393 = vmatprep.subr.bf16.mxu0 0
        %1394 = vmatpush2.bf16.msra.mxu0 0
        %1395 = vmatprep.subr.bf16.mxu0 0
        %1396 = vmatpush2.bf16.msra.mxu0 0
        %1397 = vmatprep.subr.bf16.mxu0 0
        %1398 = vmatpush2.bf16.msra.mxu0 0
        %1399 = vmatprep.subr.bf16.mxu0 0
        %1400 = vmatpush2.bf16.msra.mxu0 0
        %1401 = vmatprep.subr.bf16.mxu0 0
        %1402 = vmatpush2.bf16.msra.mxu0 0
        %1403 = vmatprep.subr.bf16.mxu0 0
        %1404 = vmatpush2.bf16.msra.mxu0 0
        %1405 = vmatprep.subr.bf16.mxu0 0
        %1406 = vmatpush2.bf16.msra.mxu0 0
        %1407 = vmatprep.subr.bf16.mxu0 0
        %1408 = vmatpush2.bf16.msra.mxu0 0
        %1409 = vmatprep.mubr.bf16.mxu0 0
        %1410 = vmatmul.mubr.bf16.gmra.mxu0 %v1375
        %v1411 = vpop.f32.mrf.mxu0
        %v1412 = vadd.f32 %v1360, %v1411
        %v1413 = vpop.f32.mrf.mxu0
        %v1414 = vpop.f32.mrf.mxu0
        %v1415 = vpop.f32.mrf.mxu0
        %1416 = vdwg.mxu0
        %v1417 = vadd.f32 %v829, %v1412
        %v1418 = vld [vmem:[%s692] sm:$0x1]
        %v1419 = vld [vmem:[%s700] sm:$0x1]
        %v1420 = vsel %vm847, %v1417, 0.0
        %1421 = vadd.xlane.f32.xlu0 %v1420
        %v1422 = vpop.xlane.xlu0 %1421
        %v1423 = vrcp.pop 32.0
        %v1424 = vmul.f32 %v1422, %v1423
        %v1425 = vsub.f32 %v1417, %v1424
        %v1426 = vmul.f32 %v1425, %v1425
        %v1427 = vsel %vm847, %v1426, 0.0
        %1428 = vadd.xlane.f32.xlu0 %v1427
        %v1429 = vpop.xlane.xlu0 %1428
        %v1430 = vmul.f32 %v1429, %v1423
        %v1431 = vadd.f32 %v1430, 1e-05
        %v1432 = vrsqrt.pop %v1431
        %v1433 = vmul.f32 %v1425, %v1432
        %v1435 = vlaneseq
        %v1436 = vshrl.u32 %v1435, 7
        %v1437 = vsub.s32 0, %v1436
        %v1438 = vrot.slane %v1418, %v1437
        %v1440 = vmul.f32 %v1433, %v1438
        %v1442 = vlaneseq
        %v1443 = vshrl.u32 %v1442, 7
        %v1444 = vsub.s32 0, %v1443
        %v1445 = vrot.slane %v1419, %v1444
        %v1447 = vadd.f32 %v1440, %v1445
        %v1448 = vpack.c.bf16 %v1447, %v1447
        %v1449 = vld [vmem:[%s809] sm:$0xf]
        %v1450 = vld [vmem:[%s809 + $0x4] sm:$0xf]
        %v1451 = vld [vmem:[%s809 + $0x8] sm:$0xf]
        %v1452 = vld [vmem:[%s809 + $0xc] sm:$0xf]
        %v1453 = vld [vmem:[%s676] sm:$0x1]
        %v1455 = vlaneseq
        %v1456 = vshrl.u32 %v1455, 7
        %v1457 = vsub.s32 0, %v1456
        %v1458 = vrot.slane %v1453, %v1457
        %v1464 = vunpack.c.l.b16 %v1449
        %v1465 = vunpack.c.l.b16 %v1450
        %v1466 = vunpack.c.l.b16 %v1451
        %v1467 = vunpack.c.l.b16 %v1452
        %v1468 = vpack.c.b16 %v1465, %v1464
        %v1469 = vpack.c.b16 %v1467, %v1466
        %v1473 = vsel %vm847, %v1448, 0
        %1475 = vmatprep.subr.bf16.mxu0 0
        %1476 = vmatpush1.bf16.msra.mxu0 0
        %1477 = vmatprep.subr.bf16.mxu0 0
        %1478 = vmatpush1.bf16.msra.mxu0 0
        %1479 = vmatprep.subr.bf16.mxu0 0
        %1480 = vmatpush1.bf16.msra.mxu0 0
        %1481 = vmatprep.subr.bf16.mxu0 0
        %1482 = vmatpush1.bf16.msra.mxu0 0
        %1483 = vmatprep.subr.bf16.mxu0 0
        %1484 = vmatpush1.bf16.msra.mxu0 0
        %1485 = vmatprep.subr.bf16.mxu0 0
        %1486 = vmatpush1.bf16.msra.mxu0 0
        %1487 = vmatprep.subr.bf16.mxu0 0
        %1488 = vmatpush1.bf16.msra.mxu0 %v1469
        %1489 = vmatprep.subr.bf16.mxu0 0
        %1490 = vmatpush1.bf16.msra.mxu0 %v1468
        %1491 = vmatprep.subr.bf16.mxu0 0
        %1492 = vmatpush2.bf16.msra.mxu0 0
        %1493 = vmatprep.subr.bf16.mxu0 0
        %1494 = vmatpush2.bf16.msra.mxu0 0
        %1495 = vmatprep.subr.bf16.mxu0 0
        %1496 = vmatpush2.bf16.msra.mxu0 0
        %1497 = vmatprep.subr.bf16.mxu0 0
        %1498 = vmatpush2.bf16.msra.mxu0 0
        %1499 = vmatprep.subr.bf16.mxu0 0
        %1500 = vmatpush2.bf16.msra.mxu0 0
        %1501 = vmatprep.subr.bf16.mxu0 0
        %1502 = vmatpush2.bf16.msra.mxu0 0
        %1503 = vmatprep.subr.bf16.mxu0 0
        %1504 = vmatpush2.bf16.msra.mxu0 0
        %1505 = vmatprep.subr.bf16.mxu0 0
        %1506 = vmatpush2.bf16.msra.mxu0 0
        %1507 = vmatprep.mubr.bf16.mxu0 0
        %1508 = vmatmul.mubr.bf16.gmra.mxu0 %v1473
        %v1509 = vpop.f32.mrf.mxu0
        %v1510 = vadd.f32 %v1458, %v1509
        %v1511 = vpop.f32.mrf.mxu0
        %v1512 = vpop.f32.mrf.mxu0
        %v1513 = vpop.f32.mrf.mxu0
        %1514 = vdwg.mxu0
        %v1515 = vmax.f32 %v1510, 0.0
        %v1516 = vpack.c.bf16 %v1515, %v1515
        %v1517 = vld [vmem:[%s814] sm:$0xf]
        %v1518 = vld [vmem:[%s814 + $0x4] sm:$0xf]
        %v1519 = vld [vmem:[%s814 + $0x8] sm:$0xf]
        %v1520 = vld [vmem:[%s814 + $0xc] sm:$0xf]
        %v1521 = vld [vmem:[%s814 + $0x10] sm:$0xf]
        %v1522 = vld [vmem:[%s814 + $0x14] sm:$0xf]
        %v1523 = vld [vmem:[%s814 + $0x18] sm:$0xf]
        %v1524 = vld [vmem:[%s814 + $0x1c] sm:$0xf]
        %v1525 = vld [vmem:[%s684] sm:$0x1]
        %v1527 = vlaneseq
        %v1528 = vshrl.u32 %v1527, 7
        %v1529 = vsub.s32 0, %v1528
        %v1530 = vrot.slane %v1525, %v1529
        %v1540 = vunpack.c.l.b16 %v1517
        %v1541 = vunpack.c.l.b16 %v1518
        %v1542 = vunpack.c.l.b16 %v1519
        %v1543 = vunpack.c.l.b16 %v1520
        %v1544 = vunpack.c.l.b16 %v1521
        %v1545 = vunpack.c.l.b16 %v1522
        %v1546 = vunpack.c.l.b16 %v1523
        %v1547 = vunpack.c.l.b16 %v1524
        %v1548 = vpack.c.b16 %v1541, %v1540
        %v1549 = vpack.c.b16 %v1543, %v1542
        %v1550 = vpack.c.b16 %v1545, %v1544
        %v1551 = vpack.c.b16 %v1547, %v1546
        %vm1556 = vcmask 523264
        %v1558 = vsel %vm1556, %v1516, 0
        %1560 = vmatprep.subr.bf16.mxu0 0
        %1561 = vmatpush1.bf16.msra.mxu0 0
        %1562 = vmatprep.subr.bf16.mxu0 0
        %1563 = vmatpush1.bf16.msra.mxu0 0
        %1564 = vmatprep.subr.bf16.mxu0 0
        %1565 = vmatpush1.bf16.msra.mxu0 0
        %1566 = vmatprep.subr.bf16.mxu0 0
        %1567 = vmatpush1.bf16.msra.mxu0 0
        %1568 = vmatprep.subr.bf16.mxu0 0
        %1569 = vmatpush1.bf16.msra.mxu0 %v1551
        %1570 = vmatprep.subr.bf16.mxu0 0
        %1571 = vmatpush1.bf16.msra.mxu0 %v1550
        %1572 = vmatprep.subr.bf16.mxu0 0
        %1573 = vmatpush1.bf16.msra.mxu0 %v1549
        %1574 = vmatprep.subr.bf16.mxu0 0
        %1575 = vmatpush1.bf16.msra.mxu0 %v1548
        %1576 = vmatprep.subr.bf16.mxu0 0
        %1577 = vmatpush2.bf16.msra.mxu0 0
        %1578 = vmatprep.subr.bf16.mxu0 0
        %1579 = vmatpush2.bf16.msra.mxu0 0
        %1580 = vmatprep.subr.bf16.mxu0 0
        %1581 = vmatpush2.bf16.msra.mxu0 0
        %1582 = vmatprep.subr.bf16.mxu0 0
        %1583 = vmatpush2.bf16.msra.mxu0 0
        %1584 = vmatprep.subr.bf16.mxu0 0
        %1585 = vmatpush2.bf16.msra.mxu0 0
        %1586 = vmatprep.subr.bf16.mxu0 0
        %1587 = vmatpush2.bf16.msra.mxu0 0
        %1588 = vmatprep.subr.bf16.mxu0 0
        %1589 = vmatpush2.bf16.msra.mxu0 0
        %1590 = vmatprep.subr.bf16.mxu0 0
        %1591 = vmatpush2.bf16.msra.mxu0 0
        %1592 = vmatprep.mubr.bf16.mxu0 0
        %1593 = vmatmul.mubr.bf16.gmra.mxu0 %v1558
        %v1594 = vpop.f32.mrf.mxu0
        %v1595 = vadd.f32 %v1530, %v1594
        %v1596 = vpop.f32.mrf.mxu0
        %v1597 = vpop.f32.mrf.mxu0
        %v1598 = vpop.f32.mrf.mxu0
        %1599 = vdwg.mxu0
        %v1600 = vadd.f32 %v1447, %v1595
        %v1601 = vld [vmem:[%s817] sm:$0x1]
        %v1602 = vld [vmem:[%s820] sm:$0x1]
        %v1603 = vsel %vm847, %v1600, 0.0
        %1604 = vadd.xlane.f32.xlu0 %v1603
        %v1605 = vpop.xlane.xlu0 %1604
        %v1606 = vmul.f32 %v1605, %v1423
        %v1607 = vsub.f32 %v1600, %v1606
        %v1608 = vmul.f32 %v1607, %v1607
        %v1609 = vsel %vm847, %v1608, 0.0
        %1610 = vadd.xlane.f32.xlu0 %v1609
        %v1611 = vpop.xlane.xlu0 %1610
        %v1612 = vmul.f32 %v1611, %v1423
        %v1613 = vadd.f32 %v1612, 1e-05
        %v1614 = vrsqrt.pop %v1613
        %v1615 = vmul.f32 %v1607, %v1614
        %v1617 = vlaneseq
        %v1618 = vshrl.u32 %v1617, 7
        %v1619 = vsub.s32 0, %v1618
        %v1620 = vrot.slane %v1601, %v1619
        %v1622 = vmul.f32 %v1615, %v1620
        %v1624 = vlaneseq
        %v1625 = vshrl.u32 %v1624, 7
        %v1626 = vsub.s32 0, %v1625
        %v1627 = vrot.slane %v1602, %v1626
        %v1629 = vadd.f32 %v1622, %v1627
        %1630 = vst.msk [vmem:[#allocation2] sm:$0xff] %vm847, %v1629
        %p1631 = scmp.eq.s32.totalorder %s47, 1
        // Predicated region
        $region113: #{tpu_custom_call.1} parent=83 // pred_check
          %p1632 = pneg %p1631
        $region114: #{tpu_custom_call.1} parent=83 // pred_check_branch
          %1634 = sbr.rel (%p1632) target = $region116
        $region115: #{tpu_custom_call.1} parent=83 // pred_region
          %v1635 = vld [vmem:[%s12] sm:$0x1]
          %v1636 = vld [vmem:[%s13] sm:$0x1]
          %v1637 = vsel %vm847, %v1629, 0.0
          %1638 = vadd.xlane.f32.xlu0 %v1637
          %v1639 = vpop.xlane.xlu0 %1638
          %v1640 = vmul.f32 %v1639, %v1423
          %v1641 = vsub.f32 %v1629, %v1640
          %v1642 = vmul.f32 %v1641, %v1641
          %v1643 = vsel %vm847, %v1642, 0.0
          %1644 = vadd.xlane.f32.xlu0 %v1643
          %v1645 = vpop.xlane.xlu0 %1644
          %v1646 = vmul.f32 %v1645, %v1423
          %v1647 = vadd.f32 %v1646, 1e-05
          %v1648 = vrsqrt.pop %v1647
          %v1649 = vmul.f32 %v1641, %v1648
          %v1651 = vlaneseq
          %v1652 = vshrl.u32 %v1651, 7
          %v1653 = vsub.s32 0, %v1652
          %v1654 = vrot.slane %v1635, %v1653
          %v1656 = vmul.f32 %v1649, %v1654
          %v1658 = vlaneseq
          %v1659 = vshrl.u32 %v1658, 7
          %v1660 = vsub.s32 0, %v1659
          %v1661 = vrot.slane %v1636, %v1660
          %v1663 = vadd.f32 %v1656, %v1661
          %v1664 = vpack.c.bf16 %v1663, %v1663
          %v1665 = vld [vmem:[%s14] sm:$0xf]
          %v1666 = vld [vmem:[%s14 + $0x4] sm:$0xf]
          %v1667 = vld [vmem:[%s14 + $0x8] sm:$0xf]
          %v1668 = vld [vmem:[%s14 + $0xc] sm:$0xf]
          %v1669 = vld [vmem:[%s15] sm:$0x1]
          %v1671 = vlaneseq
          %v1672 = vshrl.u32 %v1671, 7
          %v1673 = vsub.s32 0, %v1672
          %v1674 = vrot.slane %v1669, %v1673
          %v1680 = vunpack.c.l.b16 %v1665
          %v1681 = vunpack.c.l.b16 %v1666
          %v1682 = vunpack.c.l.b16 %v1667
          %v1683 = vunpack.c.l.b16 %v1668
          %v1684 = vpack.c.b16 %v1681, %v1680
          %v1685 = vpack.c.b16 %v1683, %v1682
          %v1689 = vsel %vm847, %v1664, 0
          %1691 = vmatprep.subr.bf16.mxu0 0
          %1692 = vmatpush1.bf16.msra.mxu0 0
          %1693 = vmatprep.subr.bf16.mxu0 0
          %1694 = vmatpush1.bf16.msra.mxu0 0
          %1695 = vmatprep.subr.bf16.mxu0 0
          %1696 = vmatpush1.bf16.msra.mxu0 0
          %1697 = vmatprep.subr.bf16.mxu0 0
          %1698 = vmatpush1.bf16.msra.mxu0 0
          %1699 = vmatprep.subr.bf16.mxu0 0
          %1700 = vmatpush1.bf16.msra.mxu0 0
          %1701 = vmatprep.subr.bf16.mxu0 0
          %1702 = vmatpush1.bf16.msra.mxu0 0
          %1703 = vmatprep.subr.bf16.mxu0 0
          %1704 = vmatpush1.bf16.msra.mxu0 %v1685
          %1705 = vmatprep.subr.bf16.mxu0 0
          %1706 = vmatpush1.bf16.msra.mxu0 %v1684
          %1707 = vmatprep.subr.bf16.mxu0 0
          %1708 = vmatpush2.bf16.msra.mxu0 0
          %1709 = vmatprep.subr.bf16.mxu0 0
          %1710 = vmatpush2.bf16.msra.mxu0 0
          %1711 = vmatprep.subr.bf16.mxu0 0
          %1712 = vmatpush2.bf16.msra.mxu0 0
          %1713 = vmatprep.subr.bf16.mxu0 0
          %1714 = vmatpush2.bf16.msra.mxu0 0
          %1715 = vmatprep.subr.bf16.mxu0 0
          %1716 = vmatpush2.bf16.msra.mxu0 0
          %1717 = vmatprep.subr.bf16.mxu0 0
          %1718 = vmatpush2.bf16.msra.mxu0 0
          %1719 = vmatprep.subr.bf16.mxu0 0
          %1720 = vmatpush2.bf16.msra.mxu0 0
          %1721 = vmatprep.subr.bf16.mxu0 0
          %1722 = vmatpush2.bf16.msra.mxu0 0
          %1723 = vmatprep.mubr.bf16.mxu0 0
          %1724 = vmatmul.mubr.bf16.gmra.mxu0 %v1689
          %v1725 = vpop.f32.mrf.mxu0
          %v1726 = vadd.f32 %v1674, %v1725
          %v1727 = vpop.f32.mrf.mxu0
          %v1728 = vpop.f32.mrf.mxu0
          %v1729 = vpop.f32.mrf.mxu0
          %1730 = vdwg.mxu0
          %1731 = vst [vmem:[%s794] sm:$0xff] %v1726
        $region116: #{tpu_custom_call.1} parent=83 // pred_fallthru
          _
        %s1732 = sand.u32 %s458, 1
        %s1733 = scalar_lea.sflag [#allocation5], %s1732
        %s1734 = sand.u32 %s458, 1
        %s1735 = smul.addr %s1734, 8
        %s1736 = scalar_lea.vmem [#allocation14], %s1735
        // Predicated region
        $region117: #{tpu_custom_call.1} parent=83 // pred_check
          %p1737 = pneg %p468
        $region118: #{tpu_custom_call.1} parent=83 // pred_check_branch
          %1739 = sbr.rel (%p1737) target = $region120
        $region119: #{tpu_custom_call.1} parent=83 // pred_region
          %s1741 = ssub.s32 128, 128
          %1742 = vsyncadd %s1733, %s1741
          %s1743 = smul.addr %s46, 128
          %s1744 = scalar_lea.hbm %s16, %s1743
          %s1746 = sshll.u32 %s1736, 4
          %s1747 = int_to_ptr.vmem [resolvable:$true] %s1746
          %1749 = dma.vmem_to_hbm [thread:$0]  %s1747, 128, %s1744, %s1733
        $region120: #{tpu_custom_call.1} parent=83 // pred_fallthru
          _
      $region84: #{tpu_custom_call.1} parent=5 // pred_fallthru
        _
      %p1750 = scmp.le.s32.totalorder 2, %s37
      // Predicated region
      $region121: #{tpu_custom_call.1} parent=5 // pred_check
        %p1751 = pneg %p1750
      $region122: #{tpu_custom_call.1} parent=5 // pred_check_branch
        %1753 = sbr.rel (%p1751) target = $region124
      $region123: #{tpu_custom_call.1} parent=5 // pred_region
        %s1754 = ssub.s32 %s37, 2
        // Predicated region
        $region125: #{tpu_custom_call.1} parent=123 // pred_check
          %p1755 = pneg %p474
        $region126: #{tpu_custom_call.1} parent=123 // pred_check_branch
          %1757 = sbr.rel (%p1755) target = $region128
        $region127: #{tpu_custom_call.1} parent=123 // pred_region
          %s1758 = sand.u32 %s459, 1
          %s1759 = scalar_lea.sflag [#allocation5], %s1758
          %s1760 = sand.u32 %s459, 1
          %s1761 = smul.addr %s1760, 8
          %s1762 = scalar_lea.vmem [#allocation14], %s1761
          %1763 = dma.done %s1759, 128
        $region128: #{tpu_custom_call.1} parent=123 // pred_fallthru
          _
      $region124: #{tpu_custom_call.1} parent=5 // pred_fallthru
        _
    $region6: #{tpu_custom_call.1} parent=1 // loop_footer
      %s41 = sadd.s32 1, %s37
    $region7: #{tpu_custom_call.1} parent=1 // loop_footer_branch
      %36 = sbr.rel target = $region3
    $region8: #{tpu_custom_call.1} parent=1 // loop_exit
      _
    %1764 = vsyncpa [#allocation4], 1
    %s1765 = scalar_lea.sflag [#allocation4], 1
    %1766 = vsyncpa %s1765, 1
    %1767 = vsyncpa [#allocation7], 1
    %s1768 = scalar_lea.sflag [#allocation7], 1
    %1769 = vsyncpa %s1768, 1
    %1770 = vsyncpa [#allocation10], 1
    %s1771 = scalar_lea.sflag [#allocation10], 1
    %1772 = vsyncpa %s1771, 1
    %1773 = vsyncpa [#allocation13], 1
    %s1774 = scalar_lea.sflag [#allocation13], 1
    %1775 = vsyncpa %s1774, 1
    %1776 = vsyncpa [#allocation5], 1
    %s1777 = scalar_lea.sflag [#allocation5], 1
    %1778 = vsyncpa %s1777, 1

</llo_original>
